<compile_context>
chip_gen: v6e
topology: v6e:2x2x1
jax: 0.10.0
libtpu: 0.0.40
codegen_flags: <defaults>
</compile_context>

<pallas_src>
import functools

import jax
import jax.numpy as jnp
from jax import lax
from jax.experimental import pallas as pl
from jax.experimental.pallas import tpu as pltpu

EPS = 1e-5


def _round_up(x, m):
    return ((x + m - 1) // m) * m


def _temporal_block_kernel(
    xh_ref,            # (1, HALO_T, Cin_p) bf16 — halo rows [t0-HALO_T, t0)
    x_ref,             # (1, TILE_T, Cin_p) bf16 — main tile rows [t0, t0+TILE_T)
    w1_ref, b1_ref,    # (K*Cin_p, Cout_p) bf16 (BN1 folded), (1, Cout_p) f32
    w2_ref, b2_ref,    # (K*Cout_p, Cout_p) bf16 (BN2 folded), (1, Cout_p) f32
    *rest,             # [wd_ref (Cin_p, Cout_p) bf16, bd_ref (1, Cout_p) f32,] o_ref
    kernel_size, dilation, fuse_taps, has_downsample,
):
    if has_downsample:
        wd_ref, bd_ref, o_ref = rest
    else:
        (o_ref,) = rest

    K, d = kernel_size, dilation
    P = (K - 1) * d                       # causal padding of the module
    TILE_T = o_ref.shape[1]
    HALO_T = xh_ref.shape[1]
    Cin_p = x_ref.shape[2]
    Cout_p = o_ref.shape[2]
    cdt = x_ref.dtype                     # MXU compute dtype (bf16)
    ti = pl.program_id(1)

    xt = x_ref[0]                         # (TILE_T, Cin_p) bf16, no f32 upcast
    if P > 0:
        xp = jnp.concatenate([xh_ref[0], xt], axis=0)   # (HALO_T+TILE_T, Cin_p)
    else:
        xp = xt

    def conv(src, w_ref, b_ref, base, rows, c_in):
        """Dilated causal conv as matmul(s); lhs built in bf16, f32 accumulation."""
        taps = [src[base + k * d: base + k * d + rows, :] for k in range(K)]
        if fuse_taps:
            # flattened K-tap contraction: best MXU shape on v6e/v7x (256-deep passes)
            lhs = jnp.concatenate(taps, axis=1) if K > 1 else taps[0]
            acc = jnp.dot(lhs, w_ref[...], preferred_element_type=jnp.float32)
        else:
            # per-tap 128-deep accumulating dots: preferred on v5e (saves vst traffic)
            acc = jnp.dot(taps[0], w_ref[0:c_in, :],
                          preferred_element_type=jnp.float32)
            for k in range(1, K):
                acc = acc + jnp.dot(taps[k], w_ref[k * c_in:(k + 1) * c_in, :],
                                    preferred_element_type=jnp.float32)
        return acc + b_ref[...]

    # ---- conv1 (+ folded BN1) + ReLU ------------------------------------------
    # Computed for P extra lead rows (conv2's causal window) — cheap recompute
    # instead of a sequential carry, keeping the time grid axis parallel.
    base1 = HALO_T - 2 * P if P > 0 else 0
    H1 = P + TILE_T
    h = jnp.maximum(conv(xp, w1_ref, b1_ref, base1, H1, Cin_p), 0.0)
    if P > 0:
        # For the first tile, conv2's causal padding must be exact zeros
        # (not conv1-of-zero-input, which would be relu(bias)).
        row = lax.broadcasted_iota(jnp.int32, (H1, 1), 0)
        h = jnp.where(jnp.logical_and(ti == 0, row < P), 0.0, h)
    hb = h.astype(cdt)                    # single cast; dropout1 = identity (eval)

    # ---- conv2 (+ folded BN2) + ReLU ------------------------------------------
    h2 = jnp.maximum(conv(hb, w2_ref, b2_ref, 0, TILE_T, Cout_p), 0.0)

    # ---- residual (1x1 downsample or identity) + add + ReLU -------------------
    if has_downsample:
        res = jnp.dot(xt, wd_ref[...],
                      preferred_element_type=jnp.float32) + bd_ref[...]
    else:
        # TODO(synk): identity residual goes through the bf16-shipped x; ship x
        #             in f32 if stacking many blocks needs a tighter skip path.
        res = xt.astype(jnp.float32)

    o_ref[0] = jnp.maximum(h2 + res, 0.0).astype(o_ref.dtype)


def prepare_params(p_torch, *, compute_dtype=jnp.bfloat16, lane=128, eps=EPS):
    """Fold eval-mode BN into the conv weights/biases, pad channels to the lane
    width (use lane=256 for >=256-channel layers on v6e/v7x MXUs), and flatten
    the K taps of each conv into a single (K*C, Cout) contraction matrix."""
    w1_t = jnp.asarray(p_torch["w1"])        # (C_out, C_in, K)   conv1.weight
    w2_t = jnp.asarray(p_torch["w2"])        # (C_out, C_out, K)  conv2.weight
    C_out, C_in, K = w1_t.shape
    has_downsample = "wd" in p_torch
    Cin_p = _round_up(C_in, lane)
    Cout_p = _round_up(C_out, lane)

    s1 = p_torch["g1"] * lax.rsqrt(p_torch["v1"] + eps)
    s2 = p_torch["g2"] * lax.rsqrt(p_torch["v2"] + eps)

    # (K, C_in, C_out) layout with the BN scale folded over the output channel.
    w1_kio = jnp.transpose(w1_t, (2, 1, 0)) * s1[None, None, :]
    w2_kio = jnp.transpose(w2_t, (2, 1, 0)) * s2[None, None, :]
    b1f = (p_torch["b1"] - p_torch["m1"]) * s1 + p_torch["be1"]
    b2f = (p_torch["b2"] - p_torch["m2"]) * s2 + p_torch["be2"]

    def pad_taps(w_kio, ci, ci_p):
        w = jnp.pad(w_kio, ((0, 0), (0, ci_p - ci), (0, Cout_p - C_out)))
        return w.reshape(K * ci_p, Cout_p).astype(compute_dtype)

    def pad_vec(v):
        return jnp.pad(v, (0, Cout_p - C_out))[None, :].astype(jnp.float32)

    prep = dict(
        w1=pad_taps(w1_kio, C_in, Cin_p), b1=pad_vec(b1f),
        w2=pad_taps(w2_kio, C_out, Cout_p), b2=pad_vec(b2f),
        has_downsample=has_downsample,
        C_in=C_in, C_out=C_out, Cin_p=Cin_p, Cout_p=Cout_p, K=K,
    )
    if has_downsample:
        wd_io = jnp.asarray(p_torch["wd"])[:, :, 0].T
        prep["wd"] = jnp.pad(wd_io, ((0, Cin_p - C_in),
                                     (0, Cout_p - C_out))).astype(compute_dtype)
        prep["bd"] = pad_vec(jnp.asarray(p_torch["bd"]))
    return prep


def temporal_block_forward(x_btc, prep, *, kernel_size, dilation, tile_t=512,
                           out_dtype=jnp.float32, fuse_taps=True):
    """x_btc: (B, T, C_in) float32. Returns (B, T, C_out) in out_dtype.
    out_dtype=jnp.bfloat16 halves the writeback on the HBM-bound v6e/v7x.
    fuse_taps=False switches to per-tap accumulating dots (preferred on v5e)."""
    B, T, C_in = x_btc.shape
    K = kernel_size
    P = (K - 1) * dilation
    Cin_p, Cout_p, C_out = prep["Cin_p"], prep["Cout_p"], prep["C_out"]
    has_downsample = prep["has_downsample"]
    cdt = prep["w1"].dtype

    SUB = 16                                     # bf16 packs 16 rows per vreg
    HALO_T = _round_up(max(2 * P, 1), SUB)       # halo covers conv1+conv2 windows
    TILE_T = _round_up(max(min(tile_t, _round_up(T, SUB)), HALO_T), HALO_T)
    Tp = _round_up(T, TILE_T)
    NT = Tp // TILE_T
    R = TILE_T // HALO_T

    # Left pad by a full TILE_T of zeros so both the main-tile and the halo
    # windows fall on block-aligned offsets of the SAME array (passed twice);
    # right pad T to a TILE_T multiple; channels padded to the lane width;
    # shipped as bf16 (half the HBM->VMEM bytes).
    x_pad = jnp.pad(x_btc, ((0, 0), (TILE_T, Tp - T),
                            (0, Cin_p - C_in))).astype(cdt)

    const2 = lambda shape: pl.BlockSpec(shape, lambda b, ti: (0, 0))
    in_specs = [
        pl.BlockSpec((1, HALO_T, Cin_p), lambda b, ti: (b, (ti + 1) * R - 1, 0)),
        pl.BlockSpec((1, TILE_T, Cin_p), lambda b, ti: (b, ti + 1, 0)),
        const2((K * Cin_p, Cout_p)), const2((1, Cout_p)),      # conv1 (BN folded)
        const2((K * Cout_p, Cout_p)), const2((1, Cout_p)),     # conv2 (BN folded)
    ]
    operands = [x_pad, x_pad, prep["w1"], prep["b1"], prep["w2"], prep["b2"]]
    if has_downsample:
        in_specs += [const2((Cin_p, Cout_p)), const2((1, Cout_p))]
        operands += [prep["wd"], prep["bd"]]
    # TODO(synk): for very large channel counts, single-buffer the constant-index
    #             weight blocks (pipeline_mode=pl.Buffered(1)) to save VMEM.

    kernel = functools.partial(_temporal_block_kernel, kernel_size=K,
                               dilation=dilation, fuse_taps=fuse_taps,
                               has_downsample=has_downsample)

    out_isz = jnp.dtype(out_dtype).itemsize
    flops = 2 * B * Tp * Cout_p * (K * Cin_p + K * Cout_p
                                   + (Cin_p if has_downsample else 0))
    bytes_accessed = int(
        x_pad.size * 2 * (1.0 + HALO_T / TILE_T)
        + (prep["w1"].size + prep["w2"].size
           + (prep["wd"].size if has_downsample else 0)) * 2
        + B * Tp * Cout_p * out_isz)

    # Explicit VMEM budget: double-buffered blocks + in-kernel intermediates + slack.
    blk_bytes = (2 * (HALO_T + TILE_T) * Cin_p * 2
                 + 2 * TILE_T * Cout_p * out_isz
                 + 2 * (prep["w1"].size + prep["w2"].size
                        + (prep["wd"].size if has_downsample else 0)) * 2
                 + 2 * 4 * Cout_p * 4)
    inter_bytes = ((HALO_T + TILE_T) * Cin_p * 2
                   + (P + TILE_T) * (K * Cin_p) * 2
                   + (P + TILE_T) * Cout_p * (4 + 2)
                   + TILE_T * (K * Cout_p) * 2
                   + TILE_T * Cout_p * 4 * 3)
    vmem_budget = int(min(96 * 2 ** 20, max(32 * 2 ** 20,
                                            2 * (blk_bytes + inter_bytes))))

    out = pl.pallas_call(
        kernel,
        out_shape=jax.ShapeDtypeStruct((B, Tp, Cout_p), out_dtype),
        grid=(B, NT),
        in_specs=in_specs,
        out_specs=pl.BlockSpec((1, TILE_T, Cout_p), lambda b, ti: (b, ti, 0)),
        compiler_params=pltpu.CompilerParams(
            dimension_semantics=("parallel", "parallel"),
            vmem_limit_bytes=vmem_budget),
        cost_estimate=pl.CostEstimate(flops=flops, transcendentals=0,
                                      bytes_accessed=bytes_accessed),
    )(*operands)
    return out[:, :T, :C_out]


# ------------------------- pure-JAX reference (PyTorch NCW semantics) ----------
def reference_forward(x_nct, p_torch, *, kernel_size, dilation):
    """Mirror of TemporalBlock.forward (eval mode) using lax.conv, NCW layout."""
    P = (kernel_size - 1) * dilation
    dn = ("NCH", "OIH", "NCH")

    def conv1d(x, w, b, dil, pad):
        y = lax.conv_general_dilated(x, w, window_strides=(1,),
                                     padding=[(pad, pad)], rhs_dilation=(dil,),
                                     dimension_numbers=dn)
        return y + b[None, :, None]

    def chop(y):
        return y[:, :, :-P] if P > 0 else y

    def bn(x, g, be, m, v):
        return (x - m[None, :, None]) * (g * lax.rsqrt(v + EPS))[None, :, None] \
               + be[None, :, None]

    out = chop(conv1d(x_nct, p_torch["w1"], p_torch["b1"], dilation, P))
    out = jax.nn.relu(bn(out, p_torch["g1"], p_torch["be1"],
                         p_torch["m1"], p_torch["v1"]))
    out = chop(conv1d(out, p_torch["w2"], p_torch["b2"], dilation, P))
    out = jax.nn.relu(bn(out, p_torch["g2"], p_torch["be2"],
                         p_torch["m2"], p_torch["v2"]))
    if "wd" in p_torch:
        residual = conv1d(x_nct, p_torch["wd"], p_torch["bd"], 1, 0)
    else:
        residual = x_nct
    return jax.nn.relu(out + residual)


def _make_params(key, C_in, C_out, K, with_downsample):
    ks = jax.random.split(key, 16)
    n = jax.random.normal
    p = dict(
        w1=0.01 * n(ks[0], (C_out, C_in, K), jnp.float32),
        b1=0.1 * n(ks[1], (C_out,), jnp.float32),
        w2=0.01 * n(ks[2], (C_out, C_out, K), jnp.float32),
        b2=0.1 * n(ks[3], (C_out,), jnp.float32),
        g1=1.0 + 0.1 * n(ks[4], (C_out,), jnp.float32),
        be1=0.1 * n(ks[5], (C_out,), jnp.float32),
        m1=0.1 * n(ks[6], (C_out,), jnp.float32),
        v1=1.0 + 0.1 * jnp.abs(n(ks[7], (C_out,), jnp.float32)),
        g2=1.0 + 0.1 * n(ks[8], (C_out,), jnp.float32),
        be2=0.1 * n(ks[9], (C_out,), jnp.float32),
        m2=0.1 * n(ks[10], (C_out,), jnp.float32),
        v2=1.0 + 0.1 * jnp.abs(n(ks[11], (C_out,), jnp.float32)),
    )
    if with_downsample:
        p["wd"] = 0.01 * n(ks[12], (C_out, C_in, 1), jnp.float32)
        p["bd"] = 0.1 * n(ks[13], (C_out,), jnp.float32)
    return p


if __name__ == "__main__":
    B, T = 2, 64
    K, dilation = 3, 2

    key = jax.random.PRNGKey(0)
    k_p1, k_p2, k_x1, k_x2 = jax.random.split(key, 4)

    # Config A: C_in != C_out (1x1 downsample residual, exercises T-tiling NT=2).
    # Config B: C_in == C_out (identity residual path, downsample skipped).
    configs = [(4, 8, k_p1, k_x1), (8, 8, k_p2, k_x2)]

    for C_in, C_out, kp, kx in configs:
        p_torch = _make_params(kp, C_in, C_out, K,
                               with_downsample=(C_in != C_out))
        prep = prepare_params(p_torch)

        x_nct = jax.random.normal(kx, (B, C_in, T), jnp.float32)  # PyTorch NCW
        x_btc = jnp.transpose(x_nct, (0, 2, 1))                   # kernel (B,T,C)

        out_btc = temporal_block_forward(x_btc, prep, kernel_size=K,
                                         dilation=dilation, tile_t=32)
        out_btc = jax.block_until_ready(out_btc)
        out_nct = jnp.transpose(out_btc, (0, 2, 1))

        ref_nct = reference_forward(x_nct, p_torch, kernel_size=K,
                                    dilation=dilation)
        assert out_nct.shape == (B, C_out, T)
        # bf16 MXU inputs / bf16-shipped x with f32 accumulation -> loosened tol.
        err = jnp.max(jnp.abs(out_nct - ref_nct))
        assert jnp.allclose(out_nct, ref_nct, atol=2e-2, rtol=2e-2), \
            f"C_in={C_in} C_out={C_out}: max err {err}"

    print("KERNEL_OK")
</pallas_src>

<mosaic_0001>
module attributes {stable_mosaic.version = 11 : i64} {
  func.func @_temporal_block_kernel(%arg0: i32, %arg1: i32, %arg2: memref<1x16x128xbf16, #tpu.memory_space<vmem>>, %arg3: memref<1x32x128xbf16, #tpu.memory_space<vmem>>, %arg4: memref<384x128xbf16, #tpu.memory_space<vmem>>, %arg5: memref<1x128xf32, #tpu.memory_space<vmem>>, %arg6: memref<384x128xbf16, #tpu.memory_space<vmem>>, %arg7: memref<1x128xf32, #tpu.memory_space<vmem>>, %arg8: memref<128x128xbf16, #tpu.memory_space<vmem>>, %arg9: memref<1x128xf32, #tpu.memory_space<vmem>>, %arg10: memref<1x32x128xf32, #tpu.memory_space<vmem>>) attributes {dimension_semantics = [#tpu.dimension_semantics<parallel>, #tpu.dimension_semantics<parallel>], iteration_bounds = array<i64: 2, 2>, scalar_prefetch = 0 : i64, scratch_operands = 0 : i64, tpu.core_type = #tpu.core_type<tc>, window_params = [{transform_indices = @transform_0, window_bounds = array<i64: 1, 16, 128>}, {transform_indices = @transform_1, window_bounds = array<i64: 1, 32, 128>}, {pipeline_mode = #tpu.pipeline_mode<synchronous>, transform_indices = @transform_2, window_bounds = array<i64: 384, 128>}, {pipeline_mode = #tpu.pipeline_mode<synchronous>, transform_indices = @transform_3, window_bounds = array<i64: 1, 128>}, {pipeline_mode = #tpu.pipeline_mode<synchronous>, transform_indices = @transform_4, window_bounds = array<i64: 384, 128>}, {pipeline_mode = #tpu.pipeline_mode<synchronous>, transform_indices = @transform_5, window_bounds = array<i64: 1, 128>}, {pipeline_mode = #tpu.pipeline_mode<synchronous>, transform_indices = @transform_6, window_bounds = array<i64: 128, 128>}, {pipeline_mode = #tpu.pipeline_mode<synchronous>, transform_indices = @transform_7, window_bounds = array<i64: 1, 128>}, {transform_indices = @transform_8, window_bounds = array<i64: 1, 32, 128>}]} {
    %c0 = arith.constant 0 : index
    %c0_0 = arith.constant 0 : index
    %c0_1 = arith.constant 0 : index
    %0 = vector.load %arg3[%c0, %c0_0, %c0_1] : memref<1x32x128xbf16, #tpu.memory_space<vmem>>, vector<1x32x128xbf16>
    %1 = vector.shape_cast %0 : vector<1x32x128xbf16> to vector<32x128xbf16>
    %c0_2 = arith.constant 0 : index
    %c0_3 = arith.constant 0 : index
    %c0_4 = arith.constant 0 : index
    %2 = vector.load %arg2[%c0_2, %c0_3, %c0_4] : memref<1x16x128xbf16, #tpu.memory_space<vmem>>, vector<1x16x128xbf16>
    %3 = vector.shape_cast %2 : vector<1x16x128xbf16> to vector<16x128xbf16>
    %4 = tpu.concatenate %3, %1 in 0 : vector<16x128xbf16>, vector<32x128xbf16> -> vector<48x128xbf16>
    %5 = vector.extract_strided_slice %4 {offsets = [8, 0], sizes = [36, 128], strides = [1, 1]} : vector<48x128xbf16> to vector<36x128xbf16>
    %6 = vector.extract_strided_slice %4 {offsets = [10, 0], sizes = [36, 128], strides = [1, 1]} : vector<48x128xbf16> to vector<36x128xbf16>
    %7 = vector.extract_strided_slice %4 {offsets = [12, 0], sizes = [36, 128], strides = [1, 1]} : vector<48x128xbf16> to vector<36x128xbf16>
    %8 = tpu.concatenate %5, %6, %7 in 1 : vector<36x128xbf16>, vector<36x128xbf16>, vector<36x128xbf16> -> vector<36x384xbf16>
    %c0_5 = arith.constant 0 : index
    %c0_6 = arith.constant 0 : index
    %9 = vector.load %arg4[%c0_5, %c0_6] : memref<384x128xbf16, #tpu.memory_space<vmem>>, vector<384x128xbf16>
    %cst = arith.constant dense<0.000000e+00> : vector<36x128xf32>
    %10 = tpu.matmul %8, %9, %cst {dimension_numbers = #tpu.dot_dimension_numbers<[1], [0], [0], [1], [0, 0, 1, 1], [], []>} : vector<36x384xbf16>, vector<384x128xbf16>, vector<36x128xf32> -> vector<36x128xf32>
    %c0_7 = arith.constant 0 : index
    %c0_8 = arith.constant 0 : index
    %11 = vector.load %arg5[%c0_7, %c0_8] : memref<1x128xf32, #tpu.memory_space<vmem>>, vector<1x128xf32>
    %12 = vector.broadcast %11 : vector<1x128xf32> to vector<36x128xf32>
    %13 = arith.addf %10, %12 : vector<36x128xf32>
    %cst_9 = arith.constant 0.000000e+00 : f32
    %14 = vector.broadcast %cst_9 : f32 to vector<36x128xf32>
    %15 = arith.maximumf %13, %14 : vector<36x128xf32>
    %16 = tpu.iota {dimensions = array<i32: 0>} : vector<36x1xi32>
    %c0_i32 = arith.constant 0 : i32
    %17 = arith.cmpi eq, %arg1, %c0_i32 : i32
    %c4_i32 = arith.constant 4 : i32
    %18 = vector.broadcast %c4_i32 : i32 to vector<36x1xi32>
    %19 = arith.cmpi slt, %16, %18 : vector<36x1xi32>
    %20 = vector.broadcast %17 : i1 to vector<36x1xi1>
    %21 = arith.andi %20, %19 : vector<36x1xi1>
    %cst_10 = arith.constant 0.000000e+00 : f32
    %22 = vector.shape_cast %21 : vector<36x1xi1> to vector<36x1xi1>
    %23 = vector.broadcast %22 : vector<36x1xi1> to vector<36x128xi1>
    %24 = vector.broadcast %cst_10 : f32 to vector<36x128xf32>
    %25 = arith.select %23, %24, %15 : vector<36x128xi1>, vector<36x128xf32>
    %26 = arith.truncf %25 : vector<36x128xf32> to vector<36x128xbf16>
    %27 = vector.extract_strided_slice %26 {offsets = [0, 0], sizes = [32, 128], strides = [1, 1]} : vector<36x128xbf16> to vector<32x128xbf16>
    %28 = vector.extract_strided_slice %26 {offsets = [2, 0], sizes = [32, 128], strides = [1, 1]} : vector<36x128xbf16> to vector<32x128xbf16>
    %29 = vector.extract_strided_slice %26 {offsets = [4, 0], sizes = [32, 128], strides = [1, 1]} : vector<36x128xbf16> to vector<32x128xbf16>
    %30 = tpu.concatenate %27, %28, %29 in 1 : vector<32x128xbf16>, vector<32x128xbf16>, vector<32x128xbf16> -> vector<32x384xbf16>
    %c0_11 = arith.constant 0 : index
    %c0_12 = arith.constant 0 : index
    %31 = vector.load %arg6[%c0_11, %c0_12] : memref<384x128xbf16, #tpu.memory_space<vmem>>, vector<384x128xbf16>
    %cst_13 = arith.constant dense<0.000000e+00> : vector<32x128xf32>
    %32 = tpu.matmul %30, %31, %cst_13 {dimension_numbers = #tpu.dot_dimension_numbers<[1], [0], [0], [1], [0, 0, 1, 1], [], []>} : vector<32x384xbf16>, vector<384x128xbf16>, vector<32x128xf32> -> vector<32x128xf32>
    %c0_14 = arith.constant 0 : index
    %c0_15 = arith.constant 0 : index
    %33 = vector.load %arg7[%c0_14, %c0_15] : memref<1x128xf32, #tpu.memory_space<vmem>>, vector<1x128xf32>
    %34 = vector.broadcast %33 : vector<1x128xf32> to vector<32x128xf32>
    %35 = arith.addf %32, %34 : vector<32x128xf32>
    %cst_16 = arith.constant 0.000000e+00 : f32
    %36 = vector.broadcast %cst_16 : f32 to vector<32x128xf32>
    %37 = arith.maximumf %35, %36 : vector<32x128xf32>
    %c0_17 = arith.constant 0 : index
    %c0_18 = arith.constant 0 : index
    %38 = vector.load %arg8[%c0_17, %c0_18] : memref<128x128xbf16, #tpu.memory_space<vmem>>, vector<128x128xbf16>
    %cst_19 = arith.constant dense<0.000000e+00> : vector<32x128xf32>
    %39 = tpu.matmul %1, %38, %cst_19 {dimension_numbers = #tpu.dot_dimension_numbers<[1], [0], [0], [1], [0, 0, 1, 1], [], []>} : vector<32x128xbf16>, vector<128x128xbf16>, vector<32x128xf32> -> vector<32x128xf32>
    %c0_20 = arith.constant 0 : index
    %c0_21 = arith.constant 0 : index
    %40 = vector.load %arg9[%c0_20, %c0_21] : memref<1x128xf32, #tpu.memory_space<vmem>>, vector<1x128xf32>
    %41 = vector.broadcast %40 : vector<1x128xf32> to vector<32x128xf32>
    %42 = arith.addf %39, %41 : vector<32x128xf32>
    %43 = arith.addf %37, %42 : vector<32x128xf32>
    %cst_22 = arith.constant 0.000000e+00 : f32
    %44 = vector.broadcast %cst_22 : f32 to vector<32x128xf32>
    %45 = arith.maximumf %43, %44 : vector<32x128xf32>
    %c0_23 = arith.constant 0 : index
    %c0_24 = arith.constant 0 : index
    %c0_25 = arith.constant 0 : index
    %46 = vector.load %arg10[%c0_23, %c0_24, %c0_25] : memref<1x32x128xf32, #tpu.memory_space<vmem>>, vector<1x32x128xf32>
    %47 = vector.shape_cast %46 : vector<1x32x128xf32> to vector<32x128xf32>
    %48 = vector.shape_cast %45 : vector<32x128xf32> to vector<1x32x128xf32>
    tpu.vector_store %arg10[%c0_23, %c0_24, %c0_25], %48 {strides = array<i32>} : memref<1x32x128xf32, #tpu.memory_space<vmem>>, vector<1x32x128xf32>,
    return
  }
  func.func @transform_0(%arg0: i32, %arg1: i32) -> (i32, i32, i32) {
    %c1_i32 = arith.constant 1 : i32
    %0 = arith.addi %arg1, %c1_i32 : i32
    %c2_i32 = arith.constant 2 : i32
    %1 = arith.muli %0, %c2_i32 : i32
    %c1_i32_0 = arith.constant 1 : i32
    %2 = arith.subi %1, %c1_i32_0 : i32
    %c0_i32 = arith.constant 0 : i32
    %c0_i32_1 = arith.constant 0 : i32
    return %arg0, %2, %c0_i32 : i32, i32, i32
  }
  func.func @transform_1(%arg0: i32, %arg1: i32) -> (i32, i32, i32) {
    %c1_i32 = arith.constant 1 : i32
    %0 = arith.addi %arg1, %c1_i32 : i32
    %c0_i32 = arith.constant 0 : i32
    %c0_i32_0 = arith.constant 0 : i32
    return %arg0, %0, %c0_i32 : i32, i32, i32
  }
  func.func @transform_2(%arg0: i32, %arg1: i32) -> (i32, i32) {
    %c0_i32 = arith.constant 0 : i32
    %c0_i32_0 = arith.constant 0 : i32
    %c0_i32_1 = arith.constant 0 : i32
    return %c0_i32, %c0_i32_0 : i32, i32
  }
  func.func @transform_3(%arg0: i32, %arg1: i32) -> (i32, i32) {
    %c0_i32 = arith.constant 0 : i32
    %c0_i32_0 = arith.constant 0 : i32
    %c0_i32_1 = arith.constant 0 : i32
    return %c0_i32, %c0_i32_0 : i32, i32
  }
  func.func @transform_4(%arg0: i32, %arg1: i32) -> (i32, i32) {
    %c0_i32 = arith.constant 0 : i32
    %c0_i32_0 = arith.constant 0 : i32
    %c0_i32_1 = arith.constant 0 : i32
    return %c0_i32, %c0_i32_0 : i32, i32
  }
  func.func @transform_5(%arg0: i32, %arg1: i32) -> (i32, i32) {
    %c0_i32 = arith.constant 0 : i32
    %c0_i32_0 = arith.constant 0 : i32
    %c0_i32_1 = arith.constant 0 : i32
    return %c0_i32, %c0_i32_0 : i32, i32
  }
  func.func @transform_6(%arg0: i32, %arg1: i32) -> (i32, i32) {
    %c0_i32 = arith.constant 0 : i32
    %c0_i32_0 = arith.constant 0 : i32
    %c0_i32_1 = arith.constant 0 : i32
    return %c0_i32, %c0_i32_0 : i32, i32
  }
  func.func @transform_7(%arg0: i32, %arg1: i32) -> (i32, i32) {
    %c0_i32 = arith.constant 0 : i32
    %c0_i32_0 = arith.constant 0 : i32
    %c0_i32_1 = arith.constant 0 : i32
    return %c0_i32, %c0_i32_0 : i32, i32
  }
  func.func @transform_8(%arg0: i32, %arg1: i32) -> (i32, i32, i32) {
    %c0_i32 = arith.constant 0 : i32
    %c0_i32_0 = arith.constant 0 : i32
    return %arg0, %arg1, %c0_i32 : i32, i32, i32
  }
}

</mosaic_0001>

<llo_original>
// kernel: tpu_custom_call.1
$region0: #{tpu_custom_call.1}
  #allocation0 [shape = 'u32[]', space=smem, size = 0x4, offset = 0x4, fixed_abs, tag = 'smem constant byte address 0x4 - core index']
  #allocation1 [shape = 'u32[144,128]{1,0:T(1,128)}', space=vmem, size = 0x12000, scoped, tag = 'internal scratch']
  %s0 = inlined_call_operand.hbm [shape: bf16[2,96,128], index: 0, kind: input, shape index: {}]
  %s1 = inlined_call_operand.hbm [shape: bf16[2,96,128], index: 1, kind: input, shape index: {}]
  %s2 = inlined_call_operand.hbm [shape: bf16[384,128], index: 2, kind: input, shape index: {}]
  %s3 = inlined_call_operand.vmem [shape: f32[1,128], index: 3, kind: input, shape index: {}]
  %s4 = inlined_call_operand.hbm [shape: bf16[384,128], index: 4, kind: input, shape index: {}]
  %s5 = inlined_call_operand.vmem [shape: f32[1,128], index: 5, kind: input, shape index: {}]
  %s6 = inlined_call_operand.hbm [shape: bf16[128,128], index: 6, kind: input, shape index: {}]
  %s7 = inlined_call_operand.vmem [shape: f32[1,128], index: 7, kind: input, shape index: {}]
  %s8 = inlined_call_operand.hbm [shape: f32[2,64,128], index: 8, kind: output, shape index: {}]
  %s9 = sld [smem:[#allocation0]]
  $region85: #{tpu_custom_call.1} parent=0
    _
  %s11 = ssub.s32 1, %s9
  %s12 = scalar_select 0, %s11, %s9
  $region1: #{tpu_custom_call.1} parent=0
    #allocation2 [shape = 'u8[8192]{0}', space=vmem, size = 0x2000, scoped, tag = 'input window, operand 0']
    #allocation3 [shape = 's32[2]{0}', space=sflag, size = 0x8, scoped, tag = 'scoped memory for tpu_custom_call.1']
    #allocation4 [shape = 's32[2]{0}', space=sflag, size = 0x8, scoped, tag = 'scoped memory for tpu_custom_call.1']
    #allocation5 [shape = 'u8[16384]{0}', space=vmem, size = 0x4000, scoped, tag = 'input window, operand 1']
    #allocation6 [shape = 's32[2]{0}', space=sflag, size = 0x8, scoped, tag = 'scoped memory for tpu_custom_call.1']
    #allocation7 [shape = 'u8[98304]{0}', space=vmem, size = 0x18000, scoped, tag = 'input window, operand 2, single buffered']
    #allocation8 [shape = 'u8[98304]{0}', space=vmem, size = 0x18000, scoped, tag = 'input window, operand 4, single buffered']
    #allocation9 [shape = 's32[1]{0}', space=sflag, size = 0x4, scoped, tag = 'scoped memory for tpu_custom_call.1']
    #allocation10 [shape = 'u8[32768]{0}', space=vmem, size = 0x8000, scoped, tag = 'input window, operand 6, single buffered']
    #allocation11 [shape = 'u8[32768]{0}', space=vmem, size = 0x8000, scoped, tag = 'output window, operand 0']
    %13 = vsyncpa [#allocation3], 0
    %s14 = scalar_lea.sflag [#allocation3], 1
    %15 = vsyncpa %s14, 0
    %16 = vsyncpa [#allocation6], 0
    %s17 = scalar_lea.sflag [#allocation6], 1
    %18 = vsyncpa %s17, 0
    %19 = vsyncpa [#allocation9], 0
    %20 = vsyncpa [#allocation4], 0
    %s21 = scalar_lea.sflag [#allocation4], 1
    %22 = vsyncpa %s21, 0
    loop: start=0, step=1, limit=6
    $region2: #{tpu_custom_call.1} parent=1 // loop_pre_header
      _
    $region3: #{tpu_custom_call.1} parent=1 // loop_header
      %s24 = sphi 0, %s28
      %p25 = scmp.ge.s32.totalorder %s24, 6
      %s31 = sphi 0, %s43
      %s32 = sphi 0, %s39
      %s33 = sphi 0, %s31
      %s34 = sphi 0, %s32
      %s35 = sphi 0, %s33
      %s36 = sphi 0, %s34
      %s54 = sphi 0, %s56
      %s57 = sphi 0, %s54
      %s58 = sphi 0, %s57
      %s74 = sphi 0, %s58
      %s84 = sphi 0, %s86
      %s87 = sphi 0, %s84
      %s88 = sphi 0, %s87
      %s104 = sphi 0, %s88
      %s108 = sphi 0, %s108
      %s110 = sphi 0, %s108
      %s111 = sphi 0, %s110
      %s125 = sphi 0, %s111
      %s129 = sphi 0, %s129
      %s131 = sphi 0, %s129
      %s132 = sphi 0, %s131
      %s146 = sphi 0, %s132
      %s150 = sphi 0, %s150
      %s152 = sphi 0, %s150
      %s153 = sphi 0, %s152
      %s167 = sphi 0, %s153
      %s171 = sphi 0, %s171
      %s173 = sphi 0, %s171
      %s174 = sphi 0, %s173
      %s188 = sphi 0, %s174
      %s192 = sphi 0, %s192
      %s194 = sphi 0, %s192
      %s195 = sphi 0, %s194
      %s209 = sphi 0, %s195
      %s213 = sphi 0, %s213
      %s215 = sphi 0, %s213
      %s216 = sphi 0, %s215
      %s230 = sphi 0, %s216
      %s238 = sphi 0, %s240
      %s241 = sphi 0, %s238
      %s242 = sphi 0, %s241
      %s258 = sphi 0, %s242
    $region4: #{tpu_custom_call.1} parent=1 // loop_header_branch
      %27 = sbr.rel (%p25) target = $region8
    $region5: #{tpu_custom_call.1} parent=1 // loop_body
      %s29 = ssub.s32 %s24, 1
      %s30 = ssub.s32 %s24, 2
      %s37 = sadd.s32 1, %s32
      %p38 = scmp.ge.s32.totalorder %s37, 2
      %s39 = scalar_select %p38, 0, %s37
      %s40 = sadd.s32 1, %s31
      %s41 = scalar_select %p38, %s40, %s31
      %p42 = scmp.ge.s32.totalorder %s41, 2
      %s43 = scalar_select %p42, 0, %s41
      %s44 = sadd.s32 %s32, 1
      %s45 = smul.u32 %s44, 2
      %s46 = ssub.s32 %s45, 1
      %s47 = sadd.s32 %s39, 1
      %s48 = smul.u32 %s47, 2
      %s49 = ssub.s32 %s48, 1
      %s50 = ssub.s32 %s31, %s43
      %s51 = ssub.s32 %s46, %s49
      %s52 = sor.u32 %s50, %s51
      %p53 = scmp.eq.s32.totalorder %s52, 0
      %s55 = sadd.s32 %s54, 1
      %s56 = scalar_select %p53, %s54, %s55
      %p59 = pneg %p53
      %p60 = scmp.eq.s32.totalorder %s24, 3
      %p61 = por %p59, %p60
      %p62 = scmp.ne.s32.totalorder %s54, %s57
      %p63 = scmp.eq.s32.totalorder %s24, 0
      %p64 = por %p62, %p63
      %p65 = scmp.ne.s32.totalorder %s54, %s57
      %p66 = scmp.eq.s32.totalorder %s29, 3
      %p67 = por %p65, %p66
      %p68 = scmp.ne.s32.totalorder %s57, %s58
      %p69 = scmp.eq.s32.totalorder %s29, 0
      %p70 = por %p68, %p69
      %p71 = scmp.ne.s32.totalorder %s57, %s58
      %p72 = scmp.eq.s32.totalorder %s30, 3
      %p73 = por %p71, %p72
      %p75 = scmp.ne.s32.totalorder %s58, %s74
      %p76 = scmp.eq.s32.totalorder %s30, 0
      %p77 = por %p75, %p76
      %s78 = sadd.s32 %s32, 1
      %s79 = sadd.s32 %s39, 1
      %s80 = ssub.s32 %s31, %s43
      %s81 = ssub.s32 %s78, %s79
      %s82 = sor.u32 %s80, %s81
      %p83 = scmp.eq.s32.totalorder %s82, 0
      %s85 = sadd.s32 %s84, 1
      %s86 = scalar_select %p83, %s84, %s85
      %p89 = pneg %p83
      %p90 = scmp.eq.s32.totalorder %s24, 3
      %p91 = por %p89, %p90
      %p92 = scmp.ne.s32.totalorder %s84, %s87
      %p93 = scmp.eq.s32.totalorder %s24, 0
      %p94 = por %p92, %p93
      %p95 = scmp.ne.s32.totalorder %s84, %s87
      %p96 = scmp.eq.s32.totalorder %s29, 3
      %p97 = por %p95, %p96
      %p98 = scmp.ne.s32.totalorder %s87, %s88
      %p99 = scmp.eq.s32.totalorder %s29, 0
      %p100 = por %p98, %p99
      %p101 = scmp.ne.s32.totalorder %s87, %s88
      %p102 = scmp.eq.s32.totalorder %s30, 3
      %p103 = por %p101, %p102
      %p105 = scmp.ne.s32.totalorder %s88, %s104
      %p106 = scmp.eq.s32.totalorder %s30, 0
      %p107 = por %p105, %p106
      %s109 = sadd.s32 %s108, 1
      %p112 = scmp.eq.s32.totalorder %s24, 3
      %p113 = scmp.ne.s32.totalorder %s108, %s110
      %p114 = scmp.eq.s32.totalorder %s24, 0
      %p115 = por %p113, %p114
      %p116 = scmp.ne.s32.totalorder %s108, %s110
      %p117 = scmp.eq.s32.totalorder %s29, 3
      %p118 = por %p116, %p117
      %p119 = scmp.ne.s32.totalorder %s110, %s111
      %p120 = scmp.eq.s32.totalorder %s29, 0
      %p121 = por %p119, %p120
      %p122 = scmp.ne.s32.totalorder %s110, %s111
      %p123 = scmp.eq.s32.totalorder %s30, 3
      %p124 = por %p122, %p123
      %p126 = scmp.ne.s32.totalorder %s111, %s125
      %p127 = scmp.eq.s32.totalorder %s30, 0
      %p128 = por %p126, %p127
      %s130 = sadd.s32 %s129, 1
      %p133 = scmp.eq.s32.totalorder %s24, 3
      %p134 = scmp.ne.s32.totalorder %s129, %s131
      %p135 = scmp.eq.s32.totalorder %s24, 0
      %p136 = por %p134, %p135
      %p137 = scmp.ne.s32.totalorder %s129, %s131
      %p138 = scmp.eq.s32.totalorder %s29, 3
      %p139 = por %p137, %p138
      %p140 = scmp.ne.s32.totalorder %s131, %s132
      %p141 = scmp.eq.s32.totalorder %s29, 0
      %p142 = por %p140, %p141
      %p143 = scmp.ne.s32.totalorder %s131, %s132
      %p144 = scmp.eq.s32.totalorder %s30, 3
      %p145 = por %p143, %p144
      %p147 = scmp.ne.s32.totalorder %s132, %s146
      %p148 = scmp.eq.s32.totalorder %s30, 0
      %p149 = por %p147, %p148
      %s151 = sadd.s32 %s150, 1
      %p154 = scmp.eq.s32.totalorder %s24, 3
      %p155 = scmp.ne.s32.totalorder %s150, %s152
      %p156 = scmp.eq.s32.totalorder %s24, 0
      %p157 = por %p155, %p156
      %p158 = scmp.ne.s32.totalorder %s150, %s152
      %p159 = scmp.eq.s32.totalorder %s29, 3
      %p160 = por %p158, %p159
      %p161 = scmp.ne.s32.totalorder %s152, %s153
      %p162 = scmp.eq.s32.totalorder %s29, 0
      %p163 = por %p161, %p162
      %p164 = scmp.ne.s32.totalorder %s152, %s153
      %p165 = scmp.eq.s32.totalorder %s30, 3
      %p166 = por %p164, %p165
      %p168 = scmp.ne.s32.totalorder %s153, %s167
      %p169 = scmp.eq.s32.totalorder %s30, 0
      %p170 = por %p168, %p169
      %s172 = sadd.s32 %s171, 1
      %p175 = scmp.eq.s32.totalorder %s24, 3
      %p176 = scmp.ne.s32.totalorder %s171, %s173
      %p177 = scmp.eq.s32.totalorder %s24, 0
      %p178 = por %p176, %p177
      %p179 = scmp.ne.s32.totalorder %s171, %s173
      %p180 = scmp.eq.s32.totalorder %s29, 3
      %p181 = por %p179, %p180
      %p182 = scmp.ne.s32.totalorder %s173, %s174
      %p183 = scmp.eq.s32.totalorder %s29, 0
      %p184 = por %p182, %p183
      %p185 = scmp.ne.s32.totalorder %s173, %s174
      %p186 = scmp.eq.s32.totalorder %s30, 3
      %p187 = por %p185, %p186
      %p189 = scmp.ne.s32.totalorder %s174, %s188
      %p190 = scmp.eq.s32.totalorder %s30, 0
      %p191 = por %p189, %p190
      %s193 = sadd.s32 %s192, 1
      %p196 = scmp.eq.s32.totalorder %s24, 3
      %p197 = scmp.ne.s32.totalorder %s192, %s194
      %p198 = scmp.eq.s32.totalorder %s24, 0
      %p199 = por %p197, %p198
      %p200 = scmp.ne.s32.totalorder %s192, %s194
      %p201 = scmp.eq.s32.totalorder %s29, 3
      %p202 = por %p200, %p201
      %p203 = scmp.ne.s32.totalorder %s194, %s195
      %p204 = scmp.eq.s32.totalorder %s29, 0
      %p205 = por %p203, %p204
      %p206 = scmp.ne.s32.totalorder %s194, %s195
      %p207 = scmp.eq.s32.totalorder %s30, 3
      %p208 = por %p206, %p207
      %p210 = scmp.ne.s32.totalorder %s195, %s209
      %p211 = scmp.eq.s32.totalorder %s30, 0
      %p212 = por %p210, %p211
      %s214 = sadd.s32 %s213, 1
      %p217 = scmp.eq.s32.totalorder %s24, 3
      %p218 = scmp.ne.s32.totalorder %s213, %s215
      %p219 = scmp.eq.s32.totalorder %s24, 0
      %p220 = por %p218, %p219
      %p221 = scmp.ne.s32.totalorder %s213, %s215
      %p222 = scmp.eq.s32.totalorder %s29, 3
      %p223 = por %p221, %p222
      %p224 = scmp.ne.s32.totalorder %s215, %s216
      %p225 = scmp.eq.s32.totalorder %s29, 0
      %p226 = por %p224, %p225
      %p227 = scmp.ne.s32.totalorder %s215, %s216
      %p228 = scmp.eq.s32.totalorder %s30, 3
      %p229 = por %p227, %p228
      %p231 = scmp.ne.s32.totalorder %s216, %s230
      %p232 = scmp.eq.s32.totalorder %s30, 0
      %p233 = por %p231, %p232
      %s234 = ssub.s32 %s31, %s43
      %s235 = ssub.s32 %s32, %s39
      %s236 = sor.u32 %s234, %s235
      %p237 = scmp.eq.s32.totalorder %s236, 0
      %s239 = sadd.s32 %s238, 1
      %s240 = scalar_select %p237, %s238, %s239
      %p243 = pneg %p237
      %p244 = scmp.eq.s32.totalorder %s24, 3
      %p245 = por %p243, %p244
      %p246 = scmp.ne.s32.totalorder %s238, %s241
      %p247 = scmp.eq.s32.totalorder %s24, 0
      %p248 = por %p246, %p247
      %p249 = scmp.ne.s32.totalorder %s238, %s241
      %p250 = scmp.eq.s32.totalorder %s29, 3
      %p251 = por %p249, %p250
      %p252 = scmp.ne.s32.totalorder %s241, %s242
      %p253 = scmp.eq.s32.totalorder %s29, 0
      %p254 = por %p252, %p253
      %p255 = scmp.ne.s32.totalorder %s241, %s242
      %p256 = scmp.eq.s32.totalorder %s30, 3
      %p257 = por %p255, %p256
      %p259 = scmp.ne.s32.totalorder %s242, %s258
      %p260 = scmp.eq.s32.totalorder %s30, 0
      %p261 = por %p259, %p260
      %p262 = scmp.le.s32.totalorder 1, %s24
      %p263 = scmp.lt.s32.totalorder %s24, 5
      %p264 = pnand %p262, %p263
      %p265 = pneg %p264
      // Predicated region
      $region9: #{tpu_custom_call.1} parent=5 // pred_check
        _
      $region10: #{tpu_custom_call.1} parent=5 // pred_check_branch
        %267 = sbr.rel (%p264) target = $region12
      $region11: #{tpu_custom_call.1} parent=5 // pred_region
        %s268 = ssub.s32 %s24, 1
        // Predicated region
        $region13: #{tpu_custom_call.1} parent=11 // pred_check
          %p269 = pneg %p121
        $region14: #{tpu_custom_call.1} parent=11 // pred_check_branch
          %271 = sbr.rel (%p269) target = $region16
        $region15: #{tpu_custom_call.1} parent=11 // pred_region
          %s273 = ssub.s32 3072, 3072
          %274 = vsyncadd [#allocation6], %s273
          %s275 = sshll.u32 [#allocation7], 4
          %s276 = int_to_ptr.vmem [resolvable:$true] %s275
          %281 = dma.hbm_to_vmem [thread:$0]  %s2, 3072, %s276, [#allocation6], 64, 64, 4
        $region16: #{tpu_custom_call.1} parent=11 // pred_fallthru
          _
        // Predicated region
        $region17: #{tpu_custom_call.1} parent=11 // pred_check
          %p282 = pneg %p142
        $region18: #{tpu_custom_call.1} parent=11 // pred_check_branch
          %284 = sbr.rel (%p282) target = $region20
        $region19: #{tpu_custom_call.1} parent=11 // pred_region
          _
        $region20: #{tpu_custom_call.1} parent=11 // pred_fallthru
          _
        // Predicated region
        $region21: #{tpu_custom_call.1} parent=11 // pred_check
          %p285 = pneg %p163
        $region22: #{tpu_custom_call.1} parent=11 // pred_check_branch
          %287 = sbr.rel (%p285) target = $region24
        $region23: #{tpu_custom_call.1} parent=11 // pred_region
          %s289 = ssub.s32 3072, 3072
          %290 = vsyncadd [#allocation9], %s289
          %s291 = sshll.u32 [#allocation8], 4
          %s292 = int_to_ptr.vmem [resolvable:$true] %s291
          %297 = dma.hbm_to_vmem [thread:$0]  %s4, 3072, %s292, [#allocation9], 64, 64, 4
        $region24: #{tpu_custom_call.1} parent=11 // pred_fallthru
          _
        // Predicated region
        $region25: #{tpu_custom_call.1} parent=11 // pred_check
          %p298 = pneg %p184
        $region26: #{tpu_custom_call.1} parent=11 // pred_check_branch
          %300 = sbr.rel (%p298) target = $region28
        $region27: #{tpu_custom_call.1} parent=11 // pred_region
          _
        $region28: #{tpu_custom_call.1} parent=11 // pred_fallthru
          _
        // Predicated region
        $region29: #{tpu_custom_call.1} parent=11 // pred_check
          %p301 = pneg %p205
        $region30: #{tpu_custom_call.1} parent=11 // pred_check_branch
          %303 = sbr.rel (%p301) target = $region32
        $region31: #{tpu_custom_call.1} parent=11 // pred_region
          %s305 = ssub.s32 1024, 1024
          %306 = vsyncadd [#allocation9], %s305
          %s307 = sshll.u32 [#allocation10], 4
          %s308 = int_to_ptr.vmem [resolvable:$true] %s307
          %313 = dma.hbm_to_vmem [thread:$0]  %s6, 1024, %s308, [#allocation9], 64, 64, 4
        $region32: #{tpu_custom_call.1} parent=11 // pred_fallthru
          _
        // Predicated region
        $region33: #{tpu_custom_call.1} parent=11 // pred_check
          %p314 = pneg %p226
        $region34: #{tpu_custom_call.1} parent=11 // pred_check_branch
          %316 = sbr.rel (%p314) target = $region36
        $region35: #{tpu_custom_call.1} parent=11 // pred_region
          _
        $region36: #{tpu_custom_call.1} parent=11 // pred_fallthru
          _
      $region12: #{tpu_custom_call.1} parent=5 // pred_fallthru
        _
      %p317 = scmp.lt.s32.totalorder %s24, 4
      // Predicated region
      $region37: #{tpu_custom_call.1} parent=5 // pred_check
        %p318 = pneg %p317
      $region38: #{tpu_custom_call.1} parent=5 // pred_check_branch
        %320 = sbr.rel (%p318) target = $region40
      $region39: #{tpu_custom_call.1} parent=5 // pred_region
        // Predicated region
        $region41: #{tpu_custom_call.1} parent=39 // pred_check
          %p321 = pneg %p64
        $region42: #{tpu_custom_call.1} parent=39 // pred_check_branch
          %323 = sbr.rel (%p321) target = $region44
        $region43: #{tpu_custom_call.1} parent=39 // pred_region
          %s324 = sand.u32 %s54, 1
          %s325 = scalar_lea.sflag [#allocation3], %s324
          %s326 = sand.u32 %s54, 1
          %s327 = smul.addr %s326, 8
          %s328 = scalar_lea.vmem [#allocation2], %s327
          %s329 = sadd.s32 %s32, 1
          %s330 = smul.u32 %s329, 2
          %s331 = ssub.s32 %s330, 1
          %s332 = smul.u32 2, %s331
          %s334 = ssub.s32 128, 128
          %335 = vsyncadd %s325, %s334
          %s336 = smul.addr %s31, 12
          %s337 = sadd.s32 %s332, %s336
          %s338 = smul.addr %s337, 64
          %s339 = scalar_lea.hbm %s0, %s338
          %s340 = sshll.u32 %s328, 4
          %s341 = int_to_ptr.vmem [resolvable:$true] %s340
          %346 = dma.hbm_to_vmem [thread:$0]  %s339, 128, %s341, %s325, 64, 64, 4
        $region44: #{tpu_custom_call.1} parent=39 // pred_fallthru
          _
        // Predicated region
        $region45: #{tpu_custom_call.1} parent=39 // pred_check
          %p347 = pneg %p94
        $region46: #{tpu_custom_call.1} parent=39 // pred_check_branch
          %349 = sbr.rel (%p347) target = $region48
        $region47: #{tpu_custom_call.1} parent=39 // pred_region
          %s350 = sand.u32 %s24, 1
          %s351 = scalar_lea.sflag [#allocation6], %s350
          %s352 = sand.u32 %s84, 1
          %s353 = smul.addr %s352, 16
          %s354 = scalar_lea.vmem [#allocation5], %s353
          %s355 = sadd.s32 %s32, 1
          %s356 = smul.u32 4, %s355
          %s358 = ssub.s32 256, 256
          %359 = vsyncadd %s351, %s358
          %s360 = smul.addr %s31, 12
          %s361 = sadd.s32 %s356, %s360
          %s362 = smul.addr %s361, 64
          %s363 = scalar_lea.hbm %s1, %s362
          %s364 = sshll.u32 %s354, 4
          %s365 = int_to_ptr.vmem [resolvable:$true] %s364
          %370 = dma.hbm_to_vmem [thread:$0]  %s363, 256, %s365, %s351, 64, 64, 4
        $region48: #{tpu_custom_call.1} parent=39 // pred_fallthru
          _
      $region40: #{tpu_custom_call.1} parent=5 // pred_fallthru
        _
      %p371 = scmp.le.s32.totalorder 1, %s24
      %p372 = scmp.lt.s32.totalorder %s24, 5
      %p373 = pnand %p371, %p372
      %p374 = pneg %p373
      // Predicated region
      $region49: #{tpu_custom_call.1} parent=5 // pred_check
        _
      $region50: #{tpu_custom_call.1} parent=5 // pred_check_branch
        %376 = sbr.rel (%p373) target = $region52
      $region51: #{tpu_custom_call.1} parent=5 // pred_region
        %s377 = ssub.s32 %s24, 1
        %s378 = sand.u32 %s57, 1
        %s379 = scalar_lea.sflag [#allocation3], %s378
        %s380 = sand.u32 %s57, 1
        %s381 = smul.addr %s380, 8
        %s382 = scalar_lea.vmem [#allocation2], %s381
        // Predicated region
        $region53: #{tpu_custom_call.1} parent=51 // pred_check
          %p383 = pneg %p70
        $region54: #{tpu_custom_call.1} parent=51 // pred_check_branch
          %385 = sbr.rel (%p383) target = $region56
        $region55: #{tpu_custom_call.1} parent=51 // pred_region
          %386 = dma.done %s379, 128
        $region56: #{tpu_custom_call.1} parent=51 // pred_fallthru
          _
        %s387 = sand.u32 %s29, 1
        %s388 = scalar_lea.sflag [#allocation6], %s387
        %s389 = sand.u32 %s87, 1
        %s390 = smul.addr %s389, 16
        %s391 = scalar_lea.vmem [#allocation5], %s390
        // Predicated region
        $region57: #{tpu_custom_call.1} parent=51 // pred_check
          %p392 = pneg %p100
        $region58: #{tpu_custom_call.1} parent=51 // pred_check_branch
          %394 = sbr.rel (%p392) target = $region60
        $region59: #{tpu_custom_call.1} parent=51 // pred_region
          %395 = dma.done %s388, 256
        $region60: #{tpu_custom_call.1} parent=51 // pred_fallthru
          _
        // Predicated region
        $region61: #{tpu_custom_call.1} parent=51 // pred_check
          %p396 = pneg %p121
        $region62: #{tpu_custom_call.1} parent=51 // pred_check_branch
          %398 = sbr.rel (%p396) target = $region64
        $region63: #{tpu_custom_call.1} parent=51 // pred_region
          %399 = dma.done [#allocation6], 3072
        $region64: #{tpu_custom_call.1} parent=51 // pred_fallthru
          _
        // Predicated region
        $region65: #{tpu_custom_call.1} parent=51 // pred_check
          %p400 = pneg %p163
        $region66: #{tpu_custom_call.1} parent=51 // pred_check_branch
          %402 = sbr.rel (%p400) target = $region68
        $region67: #{tpu_custom_call.1} parent=51 // pred_region
          %403 = dma.done [#allocation9], 3072
        $region68: #{tpu_custom_call.1} parent=51 // pred_fallthru
          _
        // Predicated region
        $region69: #{tpu_custom_call.1} parent=51 // pred_check
          %p404 = pneg %p205
        $region70: #{tpu_custom_call.1} parent=51 // pred_check_branch
          %406 = sbr.rel (%p404) target = $region72
        $region71: #{tpu_custom_call.1} parent=51 // pred_region
          %407 = dma.done [#allocation9], 1024
        $region72: #{tpu_custom_call.1} parent=51 // pred_fallthru
          _
        %s408 = sand.u32 %s57, 1
        %s409 = scalar_lea.sflag [#allocation3], %s408
        %s410 = sand.u32 %s57, 1
        %s411 = smul.addr %s410, 8
        %s412 = scalar_lea.vmem [#allocation2], %s411
        %p413 = pneg %p70
        %p414 = pneg %p67
        %s415 = sand.u32 %s29, 1
        %s416 = scalar_lea.sflag [#allocation6], %s415
        %s417 = sand.u32 %s87, 1
        %s418 = smul.addr %s417, 16
        %s419 = scalar_lea.vmem [#allocation5], %s418
        %p420 = pneg %p100
        %p421 = pneg %p97
        %p422 = pneg %p121
        %p423 = pneg %p118
        %p424 = pneg %p142
        %p425 = pneg %p139
        %p426 = pneg %p163
        %p427 = pneg %p160
        %p428 = pneg %p184
        %p429 = pneg %p181
        %p430 = pneg %p205
        %p431 = pneg %p202
        %p432 = pneg %p226
        %p433 = pneg %p223
        %p434 = pneg %p254
        %p435 = pneg %p251
        %s436 = sand.u32 %s241, 1
        %s437 = scalar_lea.sflag [#allocation4], %s436
        %s438 = sand.u32 %s241, 1
        %s439 = smul.addr %s438, 32
        %s440 = scalar_lea.vmem [#allocation11], %s439
        %s441 = sadd.s32 %s34, 1
        %s442 = smul.u32 %s441, 2
        %s443 = ssub.s32 %s442, 1
        %s444 = smul.u32 2, %s443
        %s445 = sadd.s32 %s34, 1
        %s446 = smul.u32 4, %s445
        %s447 = smul.u32 4, %s34
        %v449 = vld [vmem:[%s391] sm:$0xf]
        %v450 = vld [vmem:[%s391 + $0x4] sm:$0xf]
        %v451 = vld [vmem:[%s391 + $0x8] sm:$0xf]
        %v452 = vld [vmem:[%s391 + $0xc] sm:$0xf]
        %v453 = vld [vmem:[%s382] sm:$0xf]
        %v454 = vld [vmem:[%s382 + $0x4] sm:$0xf]
        %v457 = vunpack.c.l.b16 %v453
        %v458 = vunpack.c.l.b16 %v454
        %v459 = vpack.c.b16 %v458, %v457
        %v464 = vunpack.c.l.b16 %v449
        %v465 = vunpack.c.l.b16 %v450
        %v466 = vunpack.c.l.b16 %v451
        %v467 = vunpack.c.l.b16 %v452
        %v468 = vpack.c.b16 %v465, %v464
        %v469 = vpack.c.b16 %v467, %v466
        %vm470 = vcmask 1046528
        %v471 = vrot.slane %v459, 1
        %v472 = vrot.slane %v468, 1
        %v473 = vsel %vm470, %v471, %v472
        %v474 = vrot.slane %v469, 1
        %v475 = vsel %vm470, %v472, %v474
        %vm476 = vcmask 1045504
        %v477 = vrot.slane %v459, 2
        %v478 = vrot.slane %v468, 2
        %v479 = vsel %vm476, %v477, %v478
        %v480 = vrot.slane %v469, 2
        %v481 = vsel %vm476, %v478, %v480
        %v482 = vld [vmem:[#allocation7] sm:$0xf]
        %v483 = vld [vmem:[#allocation7 + $0x4] sm:$0xf]
        %v484 = vld [vmem:[#allocation7 + $0x8] sm:$0xf]
        %v485 = vld [vmem:[#allocation7 + $0xc] sm:$0xf]
        %v486 = vld [vmem:[#allocation7 + $0x10] sm:$0xf]
        %v487 = vld [vmem:[#allocation7 + $0x14] sm:$0xf]
        %v488 = vld [vmem:[#allocation7 + $0x18] sm:$0xf]
        %v489 = vld [vmem:[#allocation7 + $0x1c] sm:$0xf]
        %v490 = vld [vmem:[#allocation7 + $0x20] sm:$0xf]
        %v491 = vld [vmem:[#allocation7 + $0x24] sm:$0xf]
        %v492 = vld [vmem:[#allocation7 + $0x28] sm:$0xf]
        %v493 = vld [vmem:[#allocation7 + $0x2c] sm:$0xf]
        %v494 = vld [vmem:[#allocation7 + $0x30] sm:$0xf]
        %v495 = vld [vmem:[#allocation7 + $0x34] sm:$0xf]
        %v496 = vld [vmem:[#allocation7 + $0x38] sm:$0xf]
        %v497 = vld [vmem:[#allocation7 + $0x3c] sm:$0xf]
        %v498 = vld [vmem:[#allocation7 + $0x40] sm:$0xf]
        %v499 = vld [vmem:[#allocation7 + $0x44] sm:$0xf]
        %v500 = vld [vmem:[#allocation7 + $0x48] sm:$0xf]
        %v501 = vld [vmem:[#allocation7 + $0x4c] sm:$0xf]
        %v502 = vld [vmem:[#allocation7 + $0x50] sm:$0xf]
        %v503 = vld [vmem:[#allocation7 + $0x54] sm:$0xf]
        %v504 = vld [vmem:[#allocation7 + $0x58] sm:$0xf]
        %v505 = vld [vmem:[#allocation7 + $0x5c] sm:$0xf]
        %v506 = vld [vmem:[#allocation7 + $0x60] sm:$0xf]
        %v507 = vld [vmem:[#allocation7 + $0x64] sm:$0xf]
        %v508 = vld [vmem:[#allocation7 + $0x68] sm:$0xf]
        %v509 = vld [vmem:[#allocation7 + $0x6c] sm:$0xf]
        %v510 = vld [vmem:[#allocation7 + $0x70] sm:$0xf]
        %v511 = vld [vmem:[#allocation7 + $0x74] sm:$0xf]
        %v512 = vld [vmem:[#allocation7 + $0x78] sm:$0xf]
        %v513 = vld [vmem:[#allocation7 + $0x7c] sm:$0xf]
        %v514 = vld [vmem:[#allocation7 + $0x80] sm:$0xf]
        %v515 = vld [vmem:[#allocation7 + $0x84] sm:$0xf]
        %v516 = vld [vmem:[#allocation7 + $0x88] sm:$0xf]
        %v517 = vld [vmem:[#allocation7 + $0x8c] sm:$0xf]
        %v518 = vld [vmem:[#allocation7 + $0x90] sm:$0xf]
        %v519 = vld [vmem:[#allocation7 + $0x94] sm:$0xf]
        %v520 = vld [vmem:[#allocation7 + $0x98] sm:$0xf]
        %v521 = vld [vmem:[#allocation7 + $0x9c] sm:$0xf]
        %v522 = vld [vmem:[#allocation7 + $0xa0] sm:$0xf]
        %v523 = vld [vmem:[#allocation7 + $0xa4] sm:$0xf]
        %v524 = vld [vmem:[#allocation7 + $0xa8] sm:$0xf]
        %v525 = vld [vmem:[#allocation7 + $0xac] sm:$0xf]
        %v526 = vld [vmem:[#allocation7 + $0xb0] sm:$0xf]
        %v527 = vld [vmem:[#allocation7 + $0xb4] sm:$0xf]
        %v528 = vld [vmem:[#allocation7 + $0xb8] sm:$0xf]
        %v529 = vld [vmem:[#allocation7 + $0xbc] sm:$0xf]
        %v530 = vld [vmem:[%s3] sm:$0x1]
        %v532 = vlaneseq
        %v533 = vshrl.u32 %v532, 7
        %v534 = vsub.s32 0, %v533
        %v535 = vrot.slane %v530, %v534
        %vm537 = vcmask 1043456
        %v538 = vrot.slane %v459, 4
        %v539 = vrot.slane %v468, 4
        %v540 = vsel %vm537, %v538, %v539
        %v541 = vrot.slane %v473, 4
        %v542 = vrot.slane %v475, 4
        %v543 = vsel %vm537, %v541, %v542
        %v544 = vrot.slane %v479, 4
        %v545 = vrot.slane %v481, 4
        %v546 = vsel %vm537, %v544, %v545
        %v547 = vrot.slane %v469, 4
        %v548 = vsel %vm537, %v539, %v547
        %v549 = vrot.slane %v474, 4
        %v550 = vsel %vm537, %v542, %v549
        %v551 = vrot.slane %v480, 4
        %v552 = vsel %vm537, %v545, %v551
        %v610 = vunpack.c.l.b16 %v482
        %v611 = vunpack.c.l.b16 %v483
        %v612 = vunpack.c.l.b16 %v484
        %v613 = vunpack.c.l.b16 %v485
        %v614 = vunpack.c.l.b16 %v486
        %v615 = vunpack.c.l.b16 %v487
        %v616 = vunpack.c.l.b16 %v488
        %v617 = vunpack.c.l.b16 %v489
        %v618 = vunpack.c.l.b16 %v490
        %v619 = vunpack.c.l.b16 %v491
        %v620 = vunpack.c.l.b16 %v492
        %v621 = vunpack.c.l.b16 %v493
        %v622 = vunpack.c.l.b16 %v494
        %v623 = vunpack.c.l.b16 %v495
        %v624 = vunpack.c.l.b16 %v496
        %v625 = vunpack.c.l.b16 %v497
        %v626 = vunpack.c.l.b16 %v498
        %v627 = vunpack.c.l.b16 %v499
        %v628 = vunpack.c.l.b16 %v500
        %v629 = vunpack.c.l.b16 %v501
        %v630 = vunpack.c.l.b16 %v502
        %v631 = vunpack.c.l.b16 %v503
        %v632 = vunpack.c.l.b16 %v504
        %v633 = vunpack.c.l.b16 %v505
        %v634 = vunpack.c.l.b16 %v506
        %v635 = vunpack.c.l.b16 %v507
        %v636 = vunpack.c.l.b16 %v508
        %v637 = vunpack.c.l.b16 %v509
        %v638 = vunpack.c.l.b16 %v510
        %v639 = vunpack.c.l.b16 %v511
        %v640 = vunpack.c.l.b16 %v512
        %v641 = vunpack.c.l.b16 %v513
        %v642 = vunpack.c.l.b16 %v514
        %v643 = vunpack.c.l.b16 %v515
        %v644 = vunpack.c.l.b16 %v516
        %v645 = vunpack.c.l.b16 %v517
        %v646 = vunpack.c.l.b16 %v518
        %v647 = vunpack.c.l.b16 %v519
        %v648 = vunpack.c.l.b16 %v520
        %v649 = vunpack.c.l.b16 %v521
        %v650 = vunpack.c.l.b16 %v522
        %v651 = vunpack.c.l.b16 %v523
        %v652 = vunpack.c.l.b16 %v524
        %v653 = vunpack.c.l.b16 %v525
        %v654 = vunpack.c.l.b16 %v526
        %v655 = vunpack.c.l.b16 %v527
        %v656 = vunpack.c.l.b16 %v528
        %v657 = vunpack.c.l.b16 %v529
        %v658 = vpack.c.b16 %v611, %v610
        %v659 = vpack.c.b16 %v613, %v612
        %v660 = vpack.c.b16 %v615, %v614
        %v661 = vpack.c.b16 %v617, %v616
        %v662 = vpack.c.b16 %v619, %v618
        %v663 = vpack.c.b16 %v621, %v620
        %v664 = vpack.c.b16 %v623, %v622
        %v665 = vpack.c.b16 %v625, %v624
        %v666 = vpack.c.b16 %v627, %v626
        %v667 = vpack.c.b16 %v629, %v628
        %v668 = vpack.c.b16 %v631, %v630
        %v669 = vpack.c.b16 %v633, %v632
        %v670 = vpack.c.b16 %v635, %v634
        %v671 = vpack.c.b16 %v637, %v636
        %v672 = vpack.c.b16 %v639, %v638
        %v673 = vpack.c.b16 %v641, %v640
        %v674 = vpack.c.b16 %v643, %v642
        %v675 = vpack.c.b16 %v645, %v644
        %v676 = vpack.c.b16 %v647, %v646
        %v677 = vpack.c.b16 %v649, %v648
        %v678 = vpack.c.b16 %v651, %v650
        %v679 = vpack.c.b16 %v653, %v652
        %v680 = vpack.c.b16 %v655, %v654
        %v681 = vpack.c.b16 %v657, %v656
        %706 = vmatprep.subr.bf16.mxu0 0
        %707 = vmatpush1.bf16.msra.mxu0 %v665
        %708 = vmatprep.subr.bf16.mxu0 0
        %709 = vmatpush1.bf16.msra.mxu0 %v664
        %710 = vmatprep.subr.bf16.mxu0 0
        %711 = vmatpush1.bf16.msra.mxu0 %v663
        %712 = vmatprep.subr.bf16.mxu0 0
        %713 = vmatpush1.bf16.msra.mxu0 %v662
        %714 = vmatprep.subr.bf16.mxu0 0
        %715 = vmatpush1.bf16.msra.mxu0 %v661
        %716 = vmatprep.subr.bf16.mxu0 0
        %717 = vmatpush1.bf16.msra.mxu0 %v660
        %718 = vmatprep.subr.bf16.mxu0 0
        %719 = vmatpush1.bf16.msra.mxu0 %v659
        %720 = vmatprep.subr.bf16.mxu0 0
        %721 = vmatpush1.bf16.msra.mxu0 %v658
        %722 = vmatprep.subr.bf16.mxu0 0
        %723 = vmatpush2.bf16.msra.mxu0 %v673
        %724 = vmatprep.subr.bf16.mxu0 0
        %725 = vmatpush2.bf16.msra.mxu0 %v672
        %726 = vmatprep.subr.bf16.mxu0 0
        %727 = vmatpush2.bf16.msra.mxu0 %v671
        %728 = vmatprep.subr.bf16.mxu0 0
        %729 = vmatpush2.bf16.msra.mxu0 %v670
        %730 = vmatprep.subr.bf16.mxu0 0
        %731 = vmatpush2.bf16.msra.mxu0 %v669
        %732 = vmatprep.subr.bf16.mxu0 0
        %733 = vmatpush2.bf16.msra.mxu0 %v668
        %734 = vmatprep.subr.bf16.mxu0 0
        %735 = vmatpush2.bf16.msra.mxu0 %v667
        %736 = vmatprep.subr.bf16.mxu0 0
        %737 = vmatpush2.bf16.msra.mxu0 %v666
        %738 = vmatprep.mubr.bf16.mxu0 %v543
        %739 = vmatmul.mubr.bf16.gmra.mxu0 %v540
        %v740 = vpop.f32.mrf.mxu0
        %v741 = vadd.f32 %v535, %v740
        %v742 = vpop.f32.mrf.mxu0
        %v743 = vpop.f32.mrf.mxu0
        %v744 = vadd.f32 %v535, %v743
        %v745 = vpop.f32.mrf.mxu0
        %746 = vmatprep.mubr.bf16.mxu0 %v550
        %747 = vmatmul.mubr.bf16.gmra.mxu0 %v548
        %v748 = vpop.f32.mrf.mxu0
        %v749 = vadd.f32 %v535, %v748
        %v750 = vpop.f32.mrf.mxu0
        %v751 = vpop.f32.mrf.mxu0
        %v752 = vadd.f32 %v535, %v751
        %v753 = vpop.f32.mrf.mxu0
        %754 = vmatprep.mubr.bf16.mxu0 %v549
        %755 = vmatmul.mubr.bf16.gmra.mxu0 %v547
        %v756 = vpop.f32.mrf.mxu0
        %v757 = vadd.f32 %v535, %v756
        %v758 = vpop.f32.mrf.mxu0
        %v759 = vpop.f32.mrf.mxu0
        %v760 = vpop.f32.mrf.mxu0
        %761 = vdwg.mxu0
        %762 = vmatprep.subr.bf16.mxu0 0
        %763 = vmatpush1.bf16.msra.mxu0 %v681
        %764 = vmatprep.subr.bf16.mxu0 0
        %765 = vmatpush1.bf16.msra.mxu0 %v680
        %766 = vmatprep.subr.bf16.mxu0 0
        %767 = vmatpush1.bf16.msra.mxu0 %v679
        %768 = vmatprep.subr.bf16.mxu0 0
        %769 = vmatpush1.bf16.msra.mxu0 %v678
        %770 = vmatprep.subr.bf16.mxu0 0
        %771 = vmatpush1.bf16.msra.mxu0 %v677
        %772 = vmatprep.subr.bf16.mxu0 0
        %773 = vmatpush1.bf16.msra.mxu0 %v676
        %774 = vmatprep.subr.bf16.mxu0 0
        %775 = vmatpush1.bf16.msra.mxu0 %v675
        %776 = vmatprep.subr.bf16.mxu0 0
        %777 = vmatpush1.bf16.msra.mxu0 %v674
        %778 = vmatprep.subr.bf16.mxu0 0
        %779 = vmatpush2.bf16.msra.mxu0 0
        %780 = vmatprep.subr.bf16.mxu0 0
        %781 = vmatpush2.bf16.msra.mxu0 0
        %782 = vmatprep.subr.bf16.mxu0 0
        %783 = vmatpush2.bf16.msra.mxu0 0
        %784 = vmatprep.subr.bf16.mxu0 0
        %785 = vmatpush2.bf16.msra.mxu0 0
        %786 = vmatprep.subr.bf16.mxu0 0
        %787 = vmatpush2.bf16.msra.mxu0 0
        %788 = vmatprep.subr.bf16.mxu0 0
        %789 = vmatpush2.bf16.msra.mxu0 0
        %790 = vmatprep.subr.bf16.mxu0 0
        %791 = vmatpush2.bf16.msra.mxu0 0
        %792 = vmatprep.subr.bf16.mxu0 0
        %793 = vmatpush2.bf16.msra.mxu0 0
        %794 = vmatprep.mubr.bf16.mxu0 0
        %795 = vmatmul.mubr.bf16.gmra.mxu0 %v546
        %v796 = vpop.f32.mrf.mxu0
        %v797 = vadd.f32 %v741, %v796
        %v798 = vpop.f32.mrf.mxu0
        %v799 = vpop.f32.mrf.mxu0
        %v800 = vadd.f32 %v744, %v799
        %v801 = vpop.f32.mrf.mxu0
        %802 = vmatprep.mubr.bf16.mxu0 0
        %803 = vmatmul.mubr.bf16.gmra.mxu0 %v552
        %v804 = vpop.f32.mrf.mxu0
        %v805 = vadd.f32 %v749, %v804
        %v806 = vpop.f32.mrf.mxu0
        %v807 = vpop.f32.mrf.mxu0
        %v808 = vadd.f32 %v752, %v807
        %v809 = vpop.f32.mrf.mxu0
        %810 = vmatprep.mubr.bf16.mxu0 0
        %811 = vmatmul.mubr.bf16.gmra.mxu0 %v551
        %v812 = vpop.f32.mrf.mxu0
        %v813 = vadd.f32 %v757, %v812
        %v814 = vpop.f32.mrf.mxu0
        %v815 = vpop.f32.mrf.mxu0
        %v816 = vpop.f32.mrf.mxu0
        %817 = vdwg.mxu0
        %v818 = vmax.f32 %v797, 0.0
        %v819 = vmax.f32 %v800, 0.0
        %v820 = vmax.f32 %v805, 0.0
        %v821 = vmax.f32 %v808, 0.0
        %v822 = vmax.f32 %v813, 0.0
        %v823 = vlaneseq
        %v824 = vshrl.u32 %v823, 7
        %v825 = vadd.s32 %v824, 8
        %v826 = vadd.s32 %v824, 16
        %v827 = vadd.s32 %v824, 24
        %v828 = vadd.s32 %v824, 32
        %p829 = scmp.eq.s32.totalorder %s34, 0
        %vm830 = vcmp.lt.s32.totalorder %v824, 4
        %vm831 = vcmp.lt.s32.totalorder %v825, 4
        %vm832 = vcmp.lt.s32.totalorder %v826, 4
        %vm833 = vcmp.lt.s32.totalorder %v827, 4
        %vm834 = vcmp.lt.s32.totalorder %v828, 4
        %s835 = scalar_select %p829, 1, 0
        %v836 = vstv %s835
        %vm837 = vcmp.eq.s32.totalorder %v836, 1
        %vm838 = vmand %vm837, %vm830
        %vm839 = vmand %vm837, %vm831
        %vm840 = vmand %vm837, %vm832
        %vm841 = vmand %vm837, %vm833
        %vm842 = vmand %vm837, %vm834
        %v843 = vsel %vm838, 1, 0
        %v844 = vsel %vm839, 1, 0
        %v845 = vsel %vm840, 1, 0
        %v846 = vsel %vm841, 1, 0
        %v847 = vsel %vm842, 1, 0
        %vm848 = vcmp.eq.s32.totalorder %v843, 1
        %vm849 = vcmp.eq.s32.totalorder %v844, 1
        %vm850 = vcmp.eq.s32.totalorder %v845, 1
        %vm851 = vcmp.eq.s32.totalorder %v846, 1
        %vm852 = vcmp.eq.s32.totalorder %v847, 1
        %v853 = vsel %vm848, 0.0, %v818
        %v854 = vsel %vm849, 0.0, %v819
        %v855 = vsel %vm850, 0.0, %v820
        %v856 = vsel %vm851, 0.0, %v821
        %v857 = vsel %vm852, 0.0, %v822
        %v858 = vpack.c.bf16 %v854, %v853
        %v859 = vpack.c.bf16 %v856, %v855
        %v860 = vpack.c.bf16 %v857, %v857
        %v864 = vrot.slane %v858, 1
        %v865 = vrot.slane %v859, 1
        %v866 = vsel %vm470, %v864, %v865
        %v867 = vrot.slane %v860, 1
        %v868 = vsel %vm470, %v865, %v867
        %v871 = vrot.slane %v858, 2
        %v872 = vrot.slane %v859, 2
        %v873 = vsel %vm476, %v871, %v872
        %v874 = vrot.slane %v860, 2
        %v875 = vsel %vm476, %v872, %v874
        %v878 = vld [vmem:[#allocation8] sm:$0xf]
        %v879 = vld [vmem:[#allocation8 + $0x4] sm:$0xf]
        %v880 = vld [vmem:[#allocation8 + $0x8] sm:$0xf]
        %v881 = vld [vmem:[#allocation8 + $0xc] sm:$0xf]
        %v882 = vld [vmem:[#allocation8 + $0x10] sm:$0xf]
        %v883 = vld [vmem:[#allocation8 + $0x14] sm:$0xf]
        %v884 = vld [vmem:[#allocation8 + $0x18] sm:$0xf]
        %v885 = vld [vmem:[#allocation8 + $0x1c] sm:$0xf]
        %v886 = vld [vmem:[#allocation8 + $0x20] sm:$0xf]
        %v887 = vld [vmem:[#allocation8 + $0x24] sm:$0xf]
        %v888 = vld [vmem:[#allocation8 + $0x28] sm:$0xf]
        %v889 = vld [vmem:[#allocation8 + $0x2c] sm:$0xf]
        %v890 = vld [vmem:[#allocation8 + $0x30] sm:$0xf]
        %v891 = vld [vmem:[#allocation8 + $0x34] sm:$0xf]
        %v892 = vld [vmem:[#allocation8 + $0x38] sm:$0xf]
        %v893 = vld [vmem:[#allocation8 + $0x3c] sm:$0xf]
        %v894 = vld [vmem:[#allocation8 + $0x40] sm:$0xf]
        %v895 = vld [vmem:[#allocation8 + $0x44] sm:$0xf]
        %v896 = vld [vmem:[#allocation8 + $0x48] sm:$0xf]
        %v897 = vld [vmem:[#allocation8 + $0x4c] sm:$0xf]
        %v898 = vld [vmem:[#allocation8 + $0x50] sm:$0xf]
        %v899 = vld [vmem:[#allocation8 + $0x54] sm:$0xf]
        %v900 = vld [vmem:[#allocation8 + $0x58] sm:$0xf]
        %v901 = vld [vmem:[#allocation8 + $0x5c] sm:$0xf]
        %v902 = vld [vmem:[#allocation8 + $0x60] sm:$0xf]
        %v903 = vld [vmem:[#allocation8 + $0x64] sm:$0xf]
        %v904 = vld [vmem:[#allocation8 + $0x68] sm:$0xf]
        %v905 = vld [vmem:[#allocation8 + $0x6c] sm:$0xf]
        %v906 = vld [vmem:[#allocation8 + $0x70] sm:$0xf]
        %v907 = vld [vmem:[#allocation8 + $0x74] sm:$0xf]
        %v908 = vld [vmem:[#allocation8 + $0x78] sm:$0xf]
        %v909 = vld [vmem:[#allocation8 + $0x7c] sm:$0xf]
        %v910 = vld [vmem:[#allocation8 + $0x80] sm:$0xf]
        %v911 = vld [vmem:[#allocation8 + $0x84] sm:$0xf]
        %v912 = vld [vmem:[#allocation8 + $0x88] sm:$0xf]
        %v913 = vld [vmem:[#allocation8 + $0x8c] sm:$0xf]
        %v914 = vld [vmem:[#allocation8 + $0x90] sm:$0xf]
        %v915 = vld [vmem:[#allocation8 + $0x94] sm:$0xf]
        %v916 = vld [vmem:[#allocation8 + $0x98] sm:$0xf]
        %v917 = vld [vmem:[#allocation8 + $0x9c] sm:$0xf]
        %v918 = vld [vmem:[#allocation8 + $0xa0] sm:$0xf]
        %v919 = vld [vmem:[#allocation8 + $0xa4] sm:$0xf]
        %v920 = vld [vmem:[#allocation8 + $0xa8] sm:$0xf]
        %v921 = vld [vmem:[#allocation8 + $0xac] sm:$0xf]
        %v922 = vld [vmem:[#allocation8 + $0xb0] sm:$0xf]
        %v923 = vld [vmem:[#allocation8 + $0xb4] sm:$0xf]
        %v924 = vld [vmem:[#allocation8 + $0xb8] sm:$0xf]
        %v925 = vld [vmem:[#allocation8 + $0xbc] sm:$0xf]
        %v926 = vld [vmem:[%s5] sm:$0x1]
        %v928 = vlaneseq
        %v929 = vshrl.u32 %v928, 7
        %v930 = vsub.s32 0, %v929
        %v931 = vrot.slane %v926, %v930
        %v981 = vunpack.c.l.b16 %v878
        %v982 = vunpack.c.l.b16 %v879
        %v983 = vunpack.c.l.b16 %v880
        %v984 = vunpack.c.l.b16 %v881
        %v985 = vunpack.c.l.b16 %v882
        %v986 = vunpack.c.l.b16 %v883
        %v987 = vunpack.c.l.b16 %v884
        %v988 = vunpack.c.l.b16 %v885
        %v989 = vunpack.c.l.b16 %v886
        %v990 = vunpack.c.l.b16 %v887
        %v991 = vunpack.c.l.b16 %v888
        %v992 = vunpack.c.l.b16 %v889
        %v993 = vunpack.c.l.b16 %v890
        %v994 = vunpack.c.l.b16 %v891
        %v995 = vunpack.c.l.b16 %v892
        %v996 = vunpack.c.l.b16 %v893
        %v997 = vunpack.c.l.b16 %v894
        %v998 = vunpack.c.l.b16 %v895
        %v999 = vunpack.c.l.b16 %v896
        %v1000 = vunpack.c.l.b16 %v897
        %v1001 = vunpack.c.l.b16 %v898
        %v1002 = vunpack.c.l.b16 %v899
        %v1003 = vunpack.c.l.b16 %v900
        %v1004 = vunpack.c.l.b16 %v901
        %v1005 = vunpack.c.l.b16 %v902
        %v1006 = vunpack.c.l.b16 %v903
        %v1007 = vunpack.c.l.b16 %v904
        %v1008 = vunpack.c.l.b16 %v905
        %v1009 = vunpack.c.l.b16 %v906
        %v1010 = vunpack.c.l.b16 %v907
        %v1011 = vunpack.c.l.b16 %v908
        %v1012 = vunpack.c.l.b16 %v909
        %v1013 = vunpack.c.l.b16 %v910
        %v1014 = vunpack.c.l.b16 %v911
        %v1015 = vunpack.c.l.b16 %v912
        %v1016 = vunpack.c.l.b16 %v913
        %v1017 = vunpack.c.l.b16 %v914
        %v1018 = vunpack.c.l.b16 %v915
        %v1019 = vunpack.c.l.b16 %v916
        %v1020 = vunpack.c.l.b16 %v917
        %v1021 = vunpack.c.l.b16 %v918
        %v1022 = vunpack.c.l.b16 %v919
        %v1023 = vunpack.c.l.b16 %v920
        %v1024 = vunpack.c.l.b16 %v921
        %v1025 = vunpack.c.l.b16 %v922
        %v1026 = vunpack.c.l.b16 %v923
        %v1027 = vunpack.c.l.b16 %v924
        %v1028 = vunpack.c.l.b16 %v925
        %v1029 = vpack.c.b16 %v982, %v981
        %v1030 = vpack.c.b16 %v984, %v983
        %v1031 = vpack.c.b16 %v986, %v985
        %v1032 = vpack.c.b16 %v988, %v987
        %v1033 = vpack.c.b16 %v990, %v989
        %v1034 = vpack.c.b16 %v992, %v991
        %v1035 = vpack.c.b16 %v994, %v993
        %v1036 = vpack.c.b16 %v996, %v995
        %v1037 = vpack.c.b16 %v998, %v997
        %v1038 = vpack.c.b16 %v1000, %v999
        %v1039 = vpack.c.b16 %v1002, %v1001
        %v1040 = vpack.c.b16 %v1004, %v1003
        %v1041 = vpack.c.b16 %v1006, %v1005
        %v1042 = vpack.c.b16 %v1008, %v1007
        %v1043 = vpack.c.b16 %v1010, %v1009
        %v1044 = vpack.c.b16 %v1012, %v1011
        %v1045 = vpack.c.b16 %v1014, %v1013
        %v1046 = vpack.c.b16 %v1016, %v1015
        %v1047 = vpack.c.b16 %v1018, %v1017
        %v1048 = vpack.c.b16 %v1020, %v1019
        %v1049 = vpack.c.b16 %v1022, %v1021
        %v1050 = vpack.c.b16 %v1024, %v1023
        %v1051 = vpack.c.b16 %v1026, %v1025
        %v1052 = vpack.c.b16 %v1028, %v1027
        %1077 = vmatprep.subr.bf16.mxu0 0
        %1078 = vmatpush1.bf16.msra.mxu0 %v1036
        %1079 = vmatprep.subr.bf16.mxu0 0
        %1080 = vmatpush1.bf16.msra.mxu0 %v1035
        %1081 = vmatprep.subr.bf16.mxu0 0
        %1082 = vmatpush1.bf16.msra.mxu0 %v1034
        %1083 = vmatprep.subr.bf16.mxu0 0
        %1084 = vmatpush1.bf16.msra.mxu0 %v1033
        %1085 = vmatprep.subr.bf16.mxu0 0
        %1086 = vmatpush1.bf16.msra.mxu0 %v1032
        %1087 = vmatprep.subr.bf16.mxu0 0
        %1088 = vmatpush1.bf16.msra.mxu0 %v1031
        %1089 = vmatprep.subr.bf16.mxu0 0
        %1090 = vmatpush1.bf16.msra.mxu0 %v1030
        %1091 = vmatprep.subr.bf16.mxu0 0
        %1092 = vmatpush1.bf16.msra.mxu0 %v1029
        %1093 = vmatprep.subr.bf16.mxu0 0
        %1094 = vmatpush2.bf16.msra.mxu0 %v1044
        %1095 = vmatprep.subr.bf16.mxu0 0
        %1096 = vmatpush2.bf16.msra.mxu0 %v1043
        %1097 = vmatprep.subr.bf16.mxu0 0
        %1098 = vmatpush2.bf16.msra.mxu0 %v1042
        %1099 = vmatprep.subr.bf16.mxu0 0
        %1100 = vmatpush2.bf16.msra.mxu0 %v1041
        %1101 = vmatprep.subr.bf16.mxu0 0
        %1102 = vmatpush2.bf16.msra.mxu0 %v1040
        %1103 = vmatprep.subr.bf16.mxu0 0
        %1104 = vmatpush2.bf16.msra.mxu0 %v1039
        %1105 = vmatprep.subr.bf16.mxu0 0
        %1106 = vmatpush2.bf16.msra.mxu0 %v1038
        %1107 = vmatprep.subr.bf16.mxu0 0
        %1108 = vmatpush2.bf16.msra.mxu0 %v1037
        %1109 = vmatprep.mubr.bf16.mxu0 %v866
        %1110 = vmatmul.mubr.bf16.gmra.mxu0 %v858
        %v1111 = vpop.f32.mrf.mxu0
        %v1112 = vadd.f32 %v931, %v1111
        %v1113 = vpop.f32.mrf.mxu0
        %v1114 = vpop.f32.mrf.mxu0
        %v1115 = vadd.f32 %v931, %v1114
        %v1116 = vpop.f32.mrf.mxu0
        %1117 = vmatprep.mubr.bf16.mxu0 %v868
        %1118 = vmatmul.mubr.bf16.gmra.mxu0 %v859
        %v1119 = vpop.f32.mrf.mxu0
        %v1120 = vadd.f32 %v931, %v1119
        %v1121 = vpop.f32.mrf.mxu0
        %v1122 = vpop.f32.mrf.mxu0
        %v1123 = vadd.f32 %v931, %v1122
        %v1124 = vpop.f32.mrf.mxu0
        %1125 = vdwg.mxu0
        %1126 = vmatprep.subr.bf16.mxu0 0
        %1127 = vmatpush1.bf16.msra.mxu0 %v1052
        %1128 = vmatprep.subr.bf16.mxu0 0
        %1129 = vmatpush1.bf16.msra.mxu0 %v1051
        %1130 = vmatprep.subr.bf16.mxu0 0
        %1131 = vmatpush1.bf16.msra.mxu0 %v1050
        %1132 = vmatprep.subr.bf16.mxu0 0
        %1133 = vmatpush1.bf16.msra.mxu0 %v1049
        %1134 = vmatprep.subr.bf16.mxu0 0
        %1135 = vmatpush1.bf16.msra.mxu0 %v1048
        %1136 = vmatprep.subr.bf16.mxu0 0
        %1137 = vmatpush1.bf16.msra.mxu0 %v1047
        %1138 = vmatprep.subr.bf16.mxu0 0
        %1139 = vmatpush1.bf16.msra.mxu0 %v1046
        %1140 = vmatprep.subr.bf16.mxu0 0
        %1141 = vmatpush1.bf16.msra.mxu0 %v1045
        %1142 = vmatprep.subr.bf16.mxu0 0
        %1143 = vmatpush2.bf16.msra.mxu0 0
        %1144 = vmatprep.subr.bf16.mxu0 0
        %1145 = vmatpush2.bf16.msra.mxu0 0
        %1146 = vmatprep.subr.bf16.mxu0 0
        %1147 = vmatpush2.bf16.msra.mxu0 0
        %1148 = vmatprep.subr.bf16.mxu0 0
        %1149 = vmatpush2.bf16.msra.mxu0 0
        %1150 = vmatprep.subr.bf16.mxu0 0
        %1151 = vmatpush2.bf16.msra.mxu0 0
        %1152 = vmatprep.subr.bf16.mxu0 0
        %1153 = vmatpush2.bf16.msra.mxu0 0
        %1154 = vmatprep.subr.bf16.mxu0 0
        %1155 = vmatpush2.bf16.msra.mxu0 0
        %1156 = vmatprep.subr.bf16.mxu0 0
        %1157 = vmatpush2.bf16.msra.mxu0 0
        %1158 = vmatprep.mubr.bf16.mxu0 0
        %1159 = vmatmul.mubr.bf16.gmra.mxu0 %v873
        %v1160 = vpop.f32.mrf.mxu0
        %v1161 = vadd.f32 %v1112, %v1160
        %v1162 = vpop.f32.mrf.mxu0
        %v1163 = vpop.f32.mrf.mxu0
        %v1164 = vadd.f32 %v1115, %v1163
        %v1165 = vpop.f32.mrf.mxu0
        %1166 = vmatprep.mubr.bf16.mxu0 0
        %1167 = vmatmul.mubr.bf16.gmra.mxu0 %v875
        %v1168 = vpop.f32.mrf.mxu0
        %v1169 = vadd.f32 %v1120, %v1168
        %v1170 = vpop.f32.mrf.mxu0
        %v1171 = vpop.f32.mrf.mxu0
        %v1172 = vadd.f32 %v1123, %v1171
        %v1173 = vpop.f32.mrf.mxu0
        %1174 = vdwg.mxu0
        %v1175 = vmax.f32 %v1161, 0.0
        %v1176 = vmax.f32 %v1164, 0.0
        %v1177 = vmax.f32 %v1169, 0.0
        %v1178 = vmax.f32 %v1172, 0.0
        %v1179 = vld [vmem:[#allocation10] sm:$0xf]
        %v1180 = vld [vmem:[#allocation10 + $0x4] sm:$0xf]
        %v1181 = vld [vmem:[#allocation10 + $0x8] sm:$0xf]
        %v1182 = vld [vmem:[#allocation10 + $0xc] sm:$0xf]
        %v1183 = vld [vmem:[#allocation10 + $0x10] sm:$0xf]
        %v1184 = vld [vmem:[#allocation10 + $0x14] sm:$0xf]
        %v1185 = vld [vmem:[#allocation10 + $0x18] sm:$0xf]
        %v1186 = vld [vmem:[#allocation10 + $0x1c] sm:$0xf]
        %v1187 = vld [vmem:[#allocation10 + $0x20] sm:$0xf]
        %v1188 = vld [vmem:[#allocation10 + $0x24] sm:$0xf]
        %v1189 = vld [vmem:[#allocation10 + $0x28] sm:$0xf]
        %v1190 = vld [vmem:[#allocation10 + $0x2c] sm:$0xf]
        %v1191 = vld [vmem:[#allocation10 + $0x30] sm:$0xf]
        %v1192 = vld [vmem:[#allocation10 + $0x34] sm:$0xf]
        %v1193 = vld [vmem:[#allocation10 + $0x38] sm:$0xf]
        %v1194 = vld [vmem:[#allocation10 + $0x3c] sm:$0xf]
        %v1195 = vld [vmem:[%s7] sm:$0x1]
        %v1197 = vlaneseq
        %v1198 = vshrl.u32 %v1197, 7
        %v1199 = vsub.s32 0, %v1198
        %v1200 = vrot.slane %v1195, %v1199
        %v1220 = vunpack.c.l.b16 %v1179
        %v1221 = vunpack.c.l.b16 %v1180
        %v1222 = vunpack.c.l.b16 %v1181
        %v1223 = vunpack.c.l.b16 %v1182
        %v1224 = vunpack.c.l.b16 %v1183
        %v1225 = vunpack.c.l.b16 %v1184
        %v1226 = vunpack.c.l.b16 %v1185
        %v1227 = vunpack.c.l.b16 %v1186
        %v1228 = vunpack.c.l.b16 %v1187
        %v1229 = vunpack.c.l.b16 %v1188
        %v1230 = vunpack.c.l.b16 %v1189
        %v1231 = vunpack.c.l.b16 %v1190
        %v1232 = vunpack.c.l.b16 %v1191
        %v1233 = vunpack.c.l.b16 %v1192
        %v1234 = vunpack.c.l.b16 %v1193
        %v1235 = vunpack.c.l.b16 %v1194
        %v1236 = vpack.c.b16 %v1221, %v1220
        %v1237 = vpack.c.b16 %v1223, %v1222
        %v1238 = vpack.c.b16 %v1225, %v1224
        %v1239 = vpack.c.b16 %v1227, %v1226
        %v1240 = vpack.c.b16 %v1229, %v1228
        %v1241 = vpack.c.b16 %v1231, %v1230
        %v1242 = vpack.c.b16 %v1233, %v1232
        %v1243 = vpack.c.b16 %v1235, %v1234
        %1252 = vmatprep.subr.bf16.mxu0 0
        %1253 = vmatpush1.bf16.msra.mxu0 %v1243
        %1254 = vmatprep.subr.bf16.mxu0 0
        %1255 = vmatpush1.bf16.msra.mxu0 %v1242
        %1256 = vmatprep.subr.bf16.mxu0 0
        %1257 = vmatpush1.bf16.msra.mxu0 %v1241
        %1258 = vmatprep.subr.bf16.mxu0 0
        %1259 = vmatpush1.bf16.msra.mxu0 %v1240
        %1260 = vmatprep.subr.bf16.mxu0 0
        %1261 = vmatpush1.bf16.msra.mxu0 %v1239
        %1262 = vmatprep.subr.bf16.mxu0 0
        %1263 = vmatpush1.bf16.msra.mxu0 %v1238
        %1264 = vmatprep.subr.bf16.mxu0 0
        %1265 = vmatpush1.bf16.msra.mxu0 %v1237
        %1266 = vmatprep.subr.bf16.mxu0 0
        %1267 = vmatpush1.bf16.msra.mxu0 %v1236
        %1268 = vmatprep.subr.bf16.mxu0 0
        %1269 = vmatpush2.bf16.msra.mxu0 0
        %1270 = vmatprep.subr.bf16.mxu0 0
        %1271 = vmatpush2.bf16.msra.mxu0 0
        %1272 = vmatprep.subr.bf16.mxu0 0
        %1273 = vmatpush2.bf16.msra.mxu0 0
        %1274 = vmatprep.subr.bf16.mxu0 0
        %1275 = vmatpush2.bf16.msra.mxu0 0
        %1276 = vmatprep.subr.bf16.mxu0 0
        %1277 = vmatpush2.bf16.msra.mxu0 0
        %1278 = vmatprep.subr.bf16.mxu0 0
        %1279 = vmatpush2.bf16.msra.mxu0 0
        %1280 = vmatprep.subr.bf16.mxu0 0
        %1281 = vmatpush2.bf16.msra.mxu0 0
        %1282 = vmatprep.subr.bf16.mxu0 0
        %1283 = vmatpush2.bf16.msra.mxu0 0
        %1284 = vmatprep.mubr.bf16.mxu0 0
        %1285 = vmatmul.mubr.bf16.gmra.mxu0 %v468
        %v1286 = vpop.f32.mrf.mxu0
        %v1287 = vadd.f32 %v1200, %v1286
        %v1288 = vpop.f32.mrf.mxu0
        %v1289 = vpop.f32.mrf.mxu0
        %v1290 = vadd.f32 %v1200, %v1289
        %v1291 = vpop.f32.mrf.mxu0
        %1292 = vmatprep.mubr.bf16.mxu0 0
        %1293 = vmatmul.mubr.bf16.gmra.mxu0 %v469
        %v1294 = vpop.f32.mrf.mxu0
        %v1295 = vadd.f32 %v1200, %v1294
        %v1296 = vpop.f32.mrf.mxu0
        %v1297 = vpop.f32.mrf.mxu0
        %v1298 = vadd.f32 %v1200, %v1297
        %v1299 = vpop.f32.mrf.mxu0
        %1300 = vdwg.mxu0
        %v1301 = vadd.f32 %v1175, %v1287
        %v1302 = vadd.f32 %v1176, %v1290
        %v1303 = vadd.f32 %v1177, %v1295
        %v1304 = vadd.f32 %v1178, %v1298
        %v1305 = vmax.f32 %v1301, 0.0
        %v1306 = vmax.f32 %v1302, 0.0
        %v1307 = vmax.f32 %v1303, 0.0
        %v1308 = vmax.f32 %v1304, 0.0
        %1309 = vst [vmem:[%s440] sm:$0xff] %v1305
        %1310 = vst [vmem:[%s440 + $0x8] sm:$0xff] %v1306
        %1311 = vst [vmem:[%s440 + $0x10] sm:$0xff] %v1307
        %1312 = vst [vmem:[%s440 + $0x18] sm:$0xff] %v1308
        %s1313 = sand.u32 %s241, 1
        %s1314 = scalar_lea.sflag [#allocation4], %s1313
        %s1315 = sand.u32 %s241, 1
        %s1316 = smul.addr %s1315, 32
        %s1317 = scalar_lea.vmem [#allocation11], %s1316
        // Predicated region
        $region73: #{tpu_custom_call.1} parent=51 // pred_check
          %p1318 = pneg %p251
        $region74: #{tpu_custom_call.1} parent=51 // pred_check_branch
          %1320 = sbr.rel (%p1318) target = $region76
        $region75: #{tpu_custom_call.1} parent=51 // pred_region
          %s1321 = smul.u32 4, %s34
          %s1323 = ssub.s32 512, 512
          %1324 = vsyncadd %s1314, %s1323
          %s1325 = smul.addr %s33, 8
          %s1326 = sadd.s32 %s1321, %s1325
          %s1327 = smul.addr %s1326, 128
          %s1328 = scalar_lea.hbm %s8, %s1327
          %s1329 = sshll.u32 %s1317, 4
          %s1330 = int_to_ptr.vmem [resolvable:$true] %s1329
          %1335 = dma.vmem_to_hbm [thread:$0]  %s1330, 512, %s1328, %s1314, 128, 128, 8
        $region76: #{tpu_custom_call.1} parent=51 // pred_fallthru
          _
      $region52: #{tpu_custom_call.1} parent=5 // pred_fallthru
        _
      %p1336 = scmp.le.s32.totalorder 2, %s24
      // Predicated region
      $region77: #{tpu_custom_call.1} parent=5 // pred_check
        %p1337 = pneg %p1336
      $region78: #{tpu_custom_call.1} parent=5 // pred_check_branch
        %1339 = sbr.rel (%p1337) target = $region80
      $region79: #{tpu_custom_call.1} parent=5 // pred_region
        %s1340 = ssub.s32 %s24, 2
        // Predicated region
        $region81: #{tpu_custom_call.1} parent=79 // pred_check
          %p1341 = pneg %p257
        $region82: #{tpu_custom_call.1} parent=79 // pred_check_branch
          %1343 = sbr.rel (%p1341) target = $region84
        $region83: #{tpu_custom_call.1} parent=79 // pred_region
          %s1344 = sand.u32 %s242, 1
          %s1345 = scalar_lea.sflag [#allocation4], %s1344
          %s1346 = sand.u32 %s242, 1
          %s1347 = smul.addr %s1346, 32
          %s1348 = scalar_lea.vmem [#allocation11], %s1347
          %1349 = dma.done %s1345, 512
        $region84: #{tpu_custom_call.1} parent=79 // pred_fallthru
          _
      $region80: #{tpu_custom_call.1} parent=5 // pred_fallthru
        _
    $region6: #{tpu_custom_call.1} parent=1 // loop_footer
      %s28 = sadd.s32 1, %s24
    $region7: #{tpu_custom_call.1} parent=1 // loop_footer_branch
      %23 = sbr.rel target = $region3
    $region8: #{tpu_custom_call.1} parent=1 // loop_exit
      _
    %1350 = vsyncpa [#allocation3], 1
    %s1351 = scalar_lea.sflag [#allocation3], 1
    %1352 = vsyncpa %s1351, 1
    %1353 = vsyncpa [#allocation6], 1
    %s1354 = scalar_lea.sflag [#allocation6], 1
    %1355 = vsyncpa %s1354, 1
    %1356 = vsyncpa [#allocation9], 1
    %1357 = vsyncpa [#allocation4], 1
    %s1358 = scalar_lea.sflag [#allocation4], 1
    %1359 = vsyncpa %s1358, 1

</llo_original>
